<compile_context>
chip_gen: v7x
topology: tpu7x:2x2x1
jax: 0.10.0
libtpu: 0.0.40
codegen_flags: <defaults>
</compile_context>

<pallas_src>
import functools
import math

import jax
import jax.numpy as jnp
from jax.experimental import pallas as pl
from jax.experimental.pallas import tpu as pltpu

_LANES = 128


# ---------------------------------------------------------------------------
# Tiling helpers
# ---------------------------------------------------------------------------

def _round_up(x, m):
    return ((x + m - 1) // m) * m


def _sublane_align(itemsize):
    # Sublane packing of the second-minor dim: f32 -> 8, bf16 -> 16, int8 -> 32.
    return max(8, 32 // int(itemsize))


def _row_tile(r, align):
    """Row-block size: multiple of `align`, <= 512, and >= 2 blocks when possible
    so v7x's two TensorCores both get work on the 'parallel' axis."""
    if r <= align:
        return r                                  # full-extent block (legal)
    tr = _round_up(-(-r // 2), align)             # ceil(r/2) rounded to align
    return min(tr, 512)


def _spatial_tile(s, tr, itemsize, max_block_bytes=4 << 20):
    """Spatial-block size: multiple of 128, block <= ~4 MiB (so 2x buffering is
    well under every generation's VMEM), DMA rows >= ~4 KiB.  If one tile covers
    the whole extent, use the full extent (always a legal block dim)."""
    ts = max_block_bytes // max(tr * itemsize, 1)
    ts = max(1024, min(4096, ts))
    ts = max(_LANES, (ts // _LANES) * _LANES)
    if ts >= s:
        return s
    return ts


# ---------------------------------------------------------------------------
# Pallas kernels: global average pool over the spatial axis of (R, S)
# ---------------------------------------------------------------------------

def _pool_single_kernel(x_ref, o_ref, *, inv_s):
    """Single spatial tile per row block: one load, one reduce, one store."""
    x = x_ref[...].astype(jnp.float32)
    o_ref[...] = (jnp.sum(x, axis=1, keepdims=True) * inv_s).astype(o_ref.dtype)


def _pool_multi_kernel(x_ref, o_ref, acc_ref, *, inv_s, ts, rem):
    """Streaming reduction with a lane-dense (tr, 128) f32 accumulator.

    x_ref : (tr, ts) tile of the (R, S) view of x, native dtype (ts % 128 == 0).
    o_ref : (tr, 1) output block, written only on the last spatial step.
    acc_ref: (tr, 128) VMEM scratch holding per-lane-group partial sums.
    rem   : number of valid columns in the LAST spatial tile (static).
    """
    j = pl.program_id(1)
    nj = pl.num_programs(1)

    @pl.when(j == 0)
    def _():
        acc_ref[...] = jnp.zeros_like(acc_ref)

    def add_slices(valid):
        # Pure VALU: cast + add of lane-aligned 128-wide slices; no XLU, no
        # narrow masked stores in the steady state.
        acc = acc_ref[...]
        n_full = valid // _LANES
        for k in range(n_full):
            acc = acc + x_ref[:, k * _LANES:(k + 1) * _LANES].astype(jnp.float32)
        tail = valid - n_full * _LANES
        if tail:
            sl = x_ref[:, n_full * _LANES:(n_full + 1) * _LANES].astype(jnp.float32)
            lane = jax.lax.broadcasted_iota(jnp.int32, sl.shape, 1)
            acc = acc + jnp.where(lane < tail, sl, 0.0)
        acc_ref[...] = acc

    @pl.when(j < nj - 1)
    def _():
        add_slices(ts)                 # full interior tiles: unmasked

    @pl.when(j == nj - 1)
    def _():
        add_slices(rem)                # ragged last tile: statically masked
        o_ref[...] = (jnp.sum(acc_ref[...], axis=1, keepdims=True)
                      * inv_s).astype(o_ref.dtype)


def _global_avg_pool_rows(x2):
    """x2: (R, S), any float dtype -> (R, 1) f32 row means."""
    r, s = x2.shape
    itemsize = jnp.dtype(x2.dtype).itemsize
    align = _sublane_align(itemsize)
    tr = _row_tile(r, align)
    ts = _spatial_tile(s, tr, itemsize)
    inv_s = 1.0 / float(s)

    if ts >= s:
        # Single spatial tile (full-extent lane dim): simple 1-D grid.
        return pl.pallas_call(
            functools.partial(_pool_single_kernel, inv_s=inv_s),
            out_shape=jax.ShapeDtypeStruct((r, 1), jnp.float32),
            grid_spec=pltpu.PrefetchScalarGridSpec(
                num_scalar_prefetch=0,
                grid=(pl.cdiv(r, tr),),
                in_specs=[pl.BlockSpec((tr, s), lambda i: (i, 0))],
                out_specs=pl.BlockSpec((tr, 1), lambda i: (i, 0)),
            ),
            compiler_params=pltpu.CompilerParams(
                dimension_semantics=("parallel",),
                vmem_limit_bytes=32 * 1024 * 1024,
            ),
        )(x2)

    nspatial = pl.cdiv(s, ts)
    rem = s - (nspatial - 1) * ts          # valid cols of the ragged last tile
    return pl.pallas_call(
        functools.partial(_pool_multi_kernel, inv_s=inv_s, ts=ts, rem=rem),
        out_shape=jax.ShapeDtypeStruct((r, 1), jnp.float32),
        grid_spec=pltpu.PrefetchScalarGridSpec(
            num_scalar_prefetch=0,
            grid=(pl.cdiv(r, tr), nspatial),
            in_specs=[pl.BlockSpec((tr, ts), lambda i, j: (i, j))],
            out_specs=pl.BlockSpec((tr, 1), lambda i, j: (i, 0)),
            scratch_shapes=[pltpu.VMEM((tr, _LANES), jnp.float32)],
        ),
        compiler_params=pltpu.CompilerParams(
            dimension_semantics=("parallel", "arbitrary"),
            vmem_limit_bytes=32 * 1024 * 1024,
        ),
    )(x2)


# ---------------------------------------------------------------------------
# Forward pass
# ---------------------------------------------------------------------------

@jax.jit
def channel_attention_forward(params, x):
    """x: (N, C, D, H, W) -> (N, C, 1, 1, 1), matching the PyTorch module."""
    n, c, d, hh, ww = x.shape
    s = d * hh * ww

    # Free reshape: NCDHW is contiguous as (N*C, S).  The volume is read exactly
    # once, in its native dtype, by the pooling kernel.
    x2 = x.reshape(n * c, s)
    pooled = _global_avg_pool_rows(x2).reshape(n, c)            # (N, C) f32

    cr = params["w1"].shape[0]
    # PyTorch 1x1x1 Conv3d weight (Cout, Cin, 1,1,1) -> matmul layouts.
    w1 = params["w1"].reshape(cr, c).T.astype(jnp.float32)      # (C, Cr)
    w2 = params["w2"].reshape(c, cr).T.astype(jnp.float32)      # (Cr, C)
    b1 = params["b1"].reshape(1, cr).astype(jnp.float32)
    b2 = params["b2"].reshape(1, c).astype(jnp.float32)
    # Handles both nn.PReLU() (single scalar) and per-channel alphas.
    alpha = jnp.broadcast_to(
        params["alpha"].astype(jnp.float32).reshape(1, -1), (1, cr))

    # Tiny MLP on (N, C): plain jnp inside the jit (a second pallas_call would
    # be pure launch overhead per the perf review).
    h1 = pooled @ w1 + b1
    h1 = jnp.where(h1 >= 0, h1, h1 * alpha)                     # PReLU
    gate = jax.nn.sigmoid(h1 @ w2 + b2)
    return gate.astype(x.dtype).reshape(n, c, 1, 1, 1)


# ---------------------------------------------------------------------------
# Deterministic parameter init (shapes from the module __init__)
# ---------------------------------------------------------------------------

def init_channel_attention_params(key, channels, reduction=16):
    cr = max(channels // reduction, 1)
    k1, k2, k3, k4 = jax.random.split(key, 4)
    # PyTorch Conv3d weight layout: (Cout, Cin, 1, 1, 1)
    w1 = jax.random.normal(k1, (cr, channels, 1, 1, 1),
                           jnp.float32) / math.sqrt(channels)
    b1 = 0.01 * jax.random.normal(k2, (cr,), jnp.float32)
    w2 = jax.random.normal(k3, (channels, cr, 1, 1, 1),
                           jnp.float32) / math.sqrt(cr)
    b2 = 0.01 * jax.random.normal(k4, (channels,), jnp.float32)
    alpha = jnp.full((1,), 0.25, jnp.float32)      # nn.PReLU() default init
    return {"w1": w1, "b1": b1, "w2": w2, "b2": b2, "alpha": alpha}


# ---------------------------------------------------------------------------
# Pure-JAX reference (mirrors the PyTorch module)
# ---------------------------------------------------------------------------

def channel_attention_reference(params, x):
    n, c = x.shape[0], x.shape[1]
    cr = params["w1"].shape[0]
    pooled = x.astype(jnp.float32).mean(axis=(2, 3, 4))          # (N, C)
    h = pooled @ params["w1"].reshape(cr, c).T + params["b1"][None, :]
    h = jnp.where(h >= 0, h, h * params["alpha"].reshape(1, -1))
    g = jax.nn.sigmoid(h @ params["w2"].reshape(c, cr).T + params["b2"][None, :])
    return g.astype(x.dtype).reshape(n, c, 1, 1, 1)


# ---------------------------------------------------------------------------
# Demo
# ---------------------------------------------------------------------------

if __name__ == "__main__":
    key = jax.random.PRNGKey(0)
    pk1, pk2, xk1, xk2 = jax.random.split(key, 4)

    # Case A: f32, ragged spatial extent (17^3 = 4913 -> multi-tile path with a
    # masked last tile), two row blocks (megacore-friendly).
    N, C, D, H, W = 2, 64, 17, 17, 17
    params_a = init_channel_attention_params(pk1, C, reduction=16)
    x_a = jax.random.normal(xk1, (N, C, D, H, W), jnp.float32)
    out_a = jax.block_until_ready(channel_attention_forward(params_a, x_a))
    assert out_a.shape == (N, C, 1, 1, 1), out_a.shape
    ref_a = channel_attention_reference(params_a, x_a)
    assert bool(jnp.all(jnp.isfinite(out_a)))
    assert jnp.allclose(out_a, ref_a, atol=1e-5, rtol=1e-5), \
        float(jnp.max(jnp.abs(out_a - ref_a)))

    # Case B: bf16 input read natively by the kernel (f32 accumulation),
    # single-tile spatial path, output cast back to bf16.
    N2, C2, D2, H2, W2 = 2, 32, 8, 9, 10
    params_b = init_channel_attention_params(pk2, C2, reduction=16)
    x_b = jax.random.normal(xk2, (N2, C2, D2, H2, W2), jnp.float32
                            ).astype(jnp.bfloat16)
    out_b = jax.block_until_ready(channel_attention_forward(params_b, x_b))
    assert out_b.shape == (N2, C2, 1, 1, 1), out_b.shape
    assert out_b.dtype == x_b.dtype
    ref_b = channel_attention_reference(params_b, x_b)
    diff = jnp.abs(out_b.astype(jnp.float32) - ref_b.astype(jnp.float32))
    assert bool(jnp.all(jnp.isfinite(out_b.astype(jnp.float32))))
    assert float(jnp.max(diff)) < 2e-2, float(jnp.max(diff))

    print("KERNEL_OK")
</pallas_src>

<mosaic_0001>
module attributes {stable_mosaic.version = 11 : i64} {
  func.func @_pool_multi_kernel(%arg0: i32, %arg1: i32, %arg2: memref<64x4096xf32, #tpu.memory_space<vmem>>, %arg3: memref<64x1xf32, #tpu.memory_space<vmem>>, %arg4: memref<64x128xf32, #tpu.memory_space<vmem>>) attributes {dimension_semantics = [#tpu.dimension_semantics<parallel>, #tpu.dimension_semantics<arbitrary>], iteration_bounds = array<i64: 2, 2>, scalar_prefetch = 0 : i64, scratch_operands = 1 : i64, tpu.core_type = #tpu.core_type<tc>, window_params = [{transform_indices = @transform_0, window_bounds = array<i64: 64, 4096>}, {transform_indices = @transform_1, window_bounds = array<i64: 64, 1>}]} {
    %c0_i32 = arith.constant 0 : i32
    %0 = arith.cmpi eq, %arg1, %c0_i32 : i32
    %1 = arith.extui %0 : i1 to i32
    %c0_i32_0 = arith.constant 0 : i32
    %2 = arith.cmpi ne, %1, %c0_i32_0 : i32
    scf.if %2 {
      %cst = arith.constant 0.000000e+00 : f32
      %9 = vector.broadcast %cst : f32 to vector<64x128xf32>
      %c0 = arith.constant 0 : index
      %c0_4 = arith.constant 0 : index
      %10 = vector.load %arg4[%c0, %c0_4] : memref<64x128xf32, #tpu.memory_space<vmem>>, vector<64x128xf32>
      tpu.vector_store %arg4[%c0, %c0_4], %9 {strides = array<i32>} : memref<64x128xf32, #tpu.memory_space<vmem>>, vector<64x128xf32>,
    } else {
    }
    %c1_i32 = arith.constant 1 : i32
    %3 = arith.cmpi slt, %arg1, %c1_i32 : i32
    %4 = arith.extui %3 : i1 to i32
    %c0_i32_1 = arith.constant 0 : i32
    %5 = arith.cmpi ne, %4, %c0_i32_1 : i32
    scf.if %5 {
      %c0 = arith.constant 0 : index
      %c0_4 = arith.constant 0 : index
      %9 = vector.load %arg4[%c0, %c0_4] : memref<64x128xf32, #tpu.memory_space<vmem>>, vector<64x128xf32>
      %c0_5 = arith.constant 0 : index
      %c0_6 = arith.constant 0 : index
      %10 = vector.load %arg2[%c0_5, %c0_6] : memref<64x4096xf32, #tpu.memory_space<vmem>>, vector<64x128xf32>
      %11 = arith.addf %9, %10 : vector<64x128xf32>
      %c0_7 = arith.constant 0 : index
      %c128 = arith.constant 128 : index
      %12 = vector.load %arg2[%c0_7, %c128] : memref<64x4096xf32, #tpu.memory_space<vmem>>, vector<64x128xf32>
      %13 = arith.addf %11, %12 : vector<64x128xf32>
      %c0_8 = arith.constant 0 : index
      %c256 = arith.constant 256 : index
      %14 = vector.load %arg2[%c0_8, %c256] : memref<64x4096xf32, #tpu.memory_space<vmem>>, vector<64x128xf32>
      %15 = arith.addf %13, %14 : vector<64x128xf32>
      %c0_9 = arith.constant 0 : index
      %c384 = arith.constant 384 : index
      %16 = vector.load %arg2[%c0_9, %c384] : memref<64x4096xf32, #tpu.memory_space<vmem>>, vector<64x128xf32>
      %17 = arith.addf %15, %16 : vector<64x128xf32>
      %c0_10 = arith.constant 0 : index
      %c512 = arith.constant 512 : index
      %18 = vector.load %arg2[%c0_10, %c512] : memref<64x4096xf32, #tpu.memory_space<vmem>>, vector<64x128xf32>
      %19 = arith.addf %17, %18 : vector<64x128xf32>
      %c0_11 = arith.constant 0 : index
      %c640 = arith.constant 640 : index
      %20 = vector.load %arg2[%c0_11, %c640] : memref<64x4096xf32, #tpu.memory_space<vmem>>, vector<64x128xf32>
      %21 = arith.addf %19, %20 : vector<64x128xf32>
      %c0_12 = arith.constant 0 : index
      %c768 = arith.constant 768 : index
      %22 = vector.load %arg2[%c0_12, %c768] : memref<64x4096xf32, #tpu.memory_space<vmem>>, vector<64x128xf32>
      %23 = arith.addf %21, %22 : vector<64x128xf32>
      %c0_13 = arith.constant 0 : index
      %c896 = arith.constant 896 : index
      %24 = vector.load %arg2[%c0_13, %c896] : memref<64x4096xf32, #tpu.memory_space<vmem>>, vector<64x128xf32>
      %25 = arith.addf %23, %24 : vector<64x128xf32>
      %c0_14 = arith.constant 0 : index
      %c1024 = arith.constant 1024 : index
      %26 = vector.load %arg2[%c0_14, %c1024] : memref<64x4096xf32, #tpu.memory_space<vmem>>, vector<64x128xf32>
      %27 = arith.addf %25, %26 : vector<64x128xf32>
      %c0_15 = arith.constant 0 : index
      %c1152 = arith.constant 1152 : index
      %28 = vector.load %arg2[%c0_15, %c1152] : memref<64x4096xf32, #tpu.memory_space<vmem>>, vector<64x128xf32>
      %29 = arith.addf %27, %28 : vector<64x128xf32>
      %c0_16 = arith.constant 0 : index
      %c1280 = arith.constant 1280 : index
      %30 = vector.load %arg2[%c0_16, %c1280] : memref<64x4096xf32, #tpu.memory_space<vmem>>, vector<64x128xf32>
      %31 = arith.addf %29, %30 : vector<64x128xf32>
      %c0_17 = arith.constant 0 : index
      %c1408 = arith.constant 1408 : index
      %32 = vector.load %arg2[%c0_17, %c1408] : memref<64x4096xf32, #tpu.memory_space<vmem>>, vector<64x128xf32>
      %33 = arith.addf %31, %32 : vector<64x128xf32>
      %c0_18 = arith.constant 0 : index
      %c1536 = arith.constant 1536 : index
      %34 = vector.load %arg2[%c0_18, %c1536] : memref<64x4096xf32, #tpu.memory_space<vmem>>, vector<64x128xf32>
      %35 = arith.addf %33, %34 : vector<64x128xf32>
      %c0_19 = arith.constant 0 : index
      %c1664 = arith.constant 1664 : index
      %36 = vector.load %arg2[%c0_19, %c1664] : memref<64x4096xf32, #tpu.memory_space<vmem>>, vector<64x128xf32>
      %37 = arith.addf %35, %36 : vector<64x128xf32>
      %c0_20 = arith.constant 0 : index
      %c1792 = arith.constant 1792 : index
      %38 = vector.load %arg2[%c0_20, %c1792] : memref<64x4096xf32, #tpu.memory_space<vmem>>, vector<64x128xf32>
      %39 = arith.addf %37, %38 : vector<64x128xf32>
      %c0_21 = arith.constant 0 : index
      %c1920 = arith.constant 1920 : index
      %40 = vector.load %arg2[%c0_21, %c1920] : memref<64x4096xf32, #tpu.memory_space<vmem>>, vector<64x128xf32>
      %41 = arith.addf %39, %40 : vector<64x128xf32>
      %c0_22 = arith.constant 0 : index
      %c2048 = arith.constant 2048 : index
      %42 = vector.load %arg2[%c0_22, %c2048] : memref<64x4096xf32, #tpu.memory_space<vmem>>, vector<64x128xf32>
      %43 = arith.addf %41, %42 : vector<64x128xf32>
      %c0_23 = arith.constant 0 : index
      %c2176 = arith.constant 2176 : index
      %44 = vector.load %arg2[%c0_23, %c2176] : memref<64x4096xf32, #tpu.memory_space<vmem>>, vector<64x128xf32>
      %45 = arith.addf %43, %44 : vector<64x128xf32>
      %c0_24 = arith.constant 0 : index
      %c2304 = arith.constant 2304 : index
      %46 = vector.load %arg2[%c0_24, %c2304] : memref<64x4096xf32, #tpu.memory_space<vmem>>, vector<64x128xf32>
      %47 = arith.addf %45, %46 : vector<64x128xf32>
      %c0_25 = arith.constant 0 : index
      %c2432 = arith.constant 2432 : index
      %48 = vector.load %arg2[%c0_25, %c2432] : memref<64x4096xf32, #tpu.memory_space<vmem>>, vector<64x128xf32>
      %49 = arith.addf %47, %48 : vector<64x128xf32>
      %c0_26 = arith.constant 0 : index
      %c2560 = arith.constant 2560 : index
      %50 = vector.load %arg2[%c0_26, %c2560] : memref<64x4096xf32, #tpu.memory_space<vmem>>, vector<64x128xf32>
      %51 = arith.addf %49, %50 : vector<64x128xf32>
      %c0_27 = arith.constant 0 : index
      %c2688 = arith.constant 2688 : index
      %52 = vector.load %arg2[%c0_27, %c2688] : memref<64x4096xf32, #tpu.memory_space<vmem>>, vector<64x128xf32>
      %53 = arith.addf %51, %52 : vector<64x128xf32>
      %c0_28 = arith.constant 0 : index
      %c2816 = arith.constant 2816 : index
      %54 = vector.load %arg2[%c0_28, %c2816] : memref<64x4096xf32, #tpu.memory_space<vmem>>, vector<64x128xf32>
      %55 = arith.addf %53, %54 : vector<64x128xf32>
      %c0_29 = arith.constant 0 : index
      %c2944 = arith.constant 2944 : index
      %56 = vector.load %arg2[%c0_29, %c2944] : memref<64x4096xf32, #tpu.memory_space<vmem>>, vector<64x128xf32>
      %57 = arith.addf %55, %56 : vector<64x128xf32>
      %c0_30 = arith.constant 0 : index
      %c3072 = arith.constant 3072 : index
      %58 = vector.load %arg2[%c0_30, %c3072] : memref<64x4096xf32, #tpu.memory_space<vmem>>, vector<64x128xf32>
      %59 = arith.addf %57, %58 : vector<64x128xf32>
      %c0_31 = arith.constant 0 : index
      %c3200 = arith.constant 3200 : index
      %60 = vector.load %arg2[%c0_31, %c3200] : memref<64x4096xf32, #tpu.memory_space<vmem>>, vector<64x128xf32>
      %61 = arith.addf %59, %60 : vector<64x128xf32>
      %c0_32 = arith.constant 0 : index
      %c3328 = arith.constant 3328 : index
      %62 = vector.load %arg2[%c0_32, %c3328] : memref<64x4096xf32, #tpu.memory_space<vmem>>, vector<64x128xf32>
      %63 = arith.addf %61, %62 : vector<64x128xf32>
      %c0_33 = arith.constant 0 : index
      %c3456 = arith.constant 3456 : index
      %64 = vector.load %arg2[%c0_33, %c3456] : memref<64x4096xf32, #tpu.memory_space<vmem>>, vector<64x128xf32>
      %65 = arith.addf %63, %64 : vector<64x128xf32>
      %c0_34 = arith.constant 0 : index
      %c3584 = arith.constant 3584 : index
      %66 = vector.load %arg2[%c0_34, %c3584] : memref<64x4096xf32, #tpu.memory_space<vmem>>, vector<64x128xf32>
      %67 = arith.addf %65, %66 : vector<64x128xf32>
      %c0_35 = arith.constant 0 : index
      %c3712 = arith.constant 3712 : index
      %68 = vector.load %arg2[%c0_35, %c3712] : memref<64x4096xf32, #tpu.memory_space<vmem>>, vector<64x128xf32>
      %69 = arith.addf %67, %68 : vector<64x128xf32>
      %c0_36 = arith.constant 0 : index
      %c3840 = arith.constant 3840 : index
      %70 = vector.load %arg2[%c0_36, %c3840] : memref<64x4096xf32, #tpu.memory_space<vmem>>, vector<64x128xf32>
      %71 = arith.addf %69, %70 : vector<64x128xf32>
      %c0_37 = arith.constant 0 : index
      %c3968 = arith.constant 3968 : index
      %72 = vector.load %arg2[%c0_37, %c3968] : memref<64x4096xf32, #tpu.memory_space<vmem>>, vector<64x128xf32>
      %73 = arith.addf %71, %72 : vector<64x128xf32>
      %c0_38 = arith.constant 0 : index
      %c0_39 = arith.constant 0 : index
      %74 = vector.load %arg4[%c0_38, %c0_39] : memref<64x128xf32, #tpu.memory_space<vmem>>, vector<64x128xf32>
      tpu.vector_store %arg4[%c0_38, %c0_39], %73 {strides = array<i32>} : memref<64x128xf32, #tpu.memory_space<vmem>>, vector<64x128xf32>,
    } else {
    }
    %c1_i32_2 = arith.constant 1 : i32
    %6 = arith.cmpi eq, %arg1, %c1_i32_2 : i32
    %7 = arith.extui %6 : i1 to i32
    %c0_i32_3 = arith.constant 0 : i32
    %8 = arith.cmpi ne, %7, %c0_i32_3 : i32
    scf.if %8 {
      %c0 = arith.constant 0 : index
      %c0_4 = arith.constant 0 : index
      %9 = vector.load %arg4[%c0, %c0_4] : memref<64x128xf32, #tpu.memory_space<vmem>>, vector<64x128xf32>
      %c0_5 = arith.constant 0 : index
      %c0_6 = arith.constant 0 : index
      %10 = vector.load %arg2[%c0_5, %c0_6] : memref<64x4096xf32, #tpu.memory_space<vmem>>, vector<64x128xf32>
      %11 = arith.addf %9, %10 : vector<64x128xf32>
      %c0_7 = arith.constant 0 : index
      %c128 = arith.constant 128 : index
      %12 = vector.load %arg2[%c0_7, %c128] : memref<64x4096xf32, #tpu.memory_space<vmem>>, vector<64x128xf32>
      %13 = arith.addf %11, %12 : vector<64x128xf32>
      %c0_8 = arith.constant 0 : index
      %c256 = arith.constant 256 : index
      %14 = vector.load %arg2[%c0_8, %c256] : memref<64x4096xf32, #tpu.memory_space<vmem>>, vector<64x128xf32>
      %15 = arith.addf %13, %14 : vector<64x128xf32>
      %c0_9 = arith.constant 0 : index
      %c384 = arith.constant 384 : index
      %16 = vector.load %arg2[%c0_9, %c384] : memref<64x4096xf32, #tpu.memory_space<vmem>>, vector<64x128xf32>
      %17 = arith.addf %15, %16 : vector<64x128xf32>
      %c0_10 = arith.constant 0 : index
      %c512 = arith.constant 512 : index
      %18 = vector.load %arg2[%c0_10, %c512] : memref<64x4096xf32, #tpu.memory_space<vmem>>, vector<64x128xf32>
      %19 = arith.addf %17, %18 : vector<64x128xf32>
      %c0_11 = arith.constant 0 : index
      %c640 = arith.constant 640 : index
      %20 = vector.load %arg2[%c0_11, %c640] : memref<64x4096xf32, #tpu.memory_space<vmem>>, vector<64x128xf32>
      %21 = arith.addf %19, %20 : vector<64x128xf32>
      %c0_12 = arith.constant 0 : index
      %c768 = arith.constant 768 : index
      %22 = vector.load %arg2[%c0_12, %c768] : memref<64x4096xf32, #tpu.memory_space<vmem>>, vector<64x128xf32>
      %23 = tpu.iota {dimensions = array<i32: 1>} : vector<64x128xi32>
      %c49_i32 = arith.constant 49 : i32
      %24 = vector.broadcast %c49_i32 : i32 to vector<64x128xi32>
      %25 = arith.cmpi slt, %23, %24 : vector<64x128xi32>
      %cst = arith.constant 0.000000e+00 : f32
      %26 = vector.broadcast %cst : f32 to vector<64x128xf32>
      %27 = arith.select %25, %22, %26 : vector<64x128xi1>, vector<64x128xf32>
      %28 = arith.addf %21, %27 : vector<64x128xf32>
      %c0_13 = arith.constant 0 : index
      %c0_14 = arith.constant 0 : index
      %29 = vector.load %arg4[%c0_13, %c0_14] : memref<64x128xf32, #tpu.memory_space<vmem>>, vector<64x128xf32>
      tpu.vector_store %arg4[%c0_13, %c0_14], %28 {strides = array<i32>} : memref<64x128xf32, #tpu.memory_space<vmem>>, vector<64x128xf32>,
      %c0_15 = arith.constant 0 : index
      %c0_16 = arith.constant 0 : index
      %30 = vector.load %arg4[%c0_15, %c0_16] : memref<64x128xf32, #tpu.memory_space<vmem>>, vector<64x128xf32>
      %cst_17 = arith.constant dense<0.000000e+00> : vector<64xf32>
      %31 = vector.multi_reduction <add>, %30, %cst_17 [1] : vector<64x128xf32> to vector<64xf32>
      %32 = vector.shape_cast %31 : vector<64xf32> to vector<64x1xf32>
      %cst_18 = arith.constant 2.03541626E-4 : f32
      %33 = vector.broadcast %cst_18 : f32 to vector<64x1xf32>
      %34 = arith.mulf %32, %33 : vector<64x1xf32>
      %c0_19 = arith.constant 0 : index
      %c0_20 = arith.constant 0 : index
      %35 = vector.load %arg3[%c0_19, %c0_20] : memref<64x1xf32, #tpu.memory_space<vmem>>, vector<64x1xf32>
      tpu.vector_store %arg3[%c0_19, %c0_20], %34 {strides = array<i32>} : memref<64x1xf32, #tpu.memory_space<vmem>>, vector<64x1xf32>,
    } else {
    }
    return
  }
  func.func @transform_0(%arg0: i32, %arg1: i32) -> (i32, i32) {
    %c0_i32 = arith.constant 0 : i32
    return %arg0, %arg1 : i32, i32
  }
  func.func @transform_1(%arg0: i32, %arg1: i32) -> (i32, i32) {
    %c0_i32 = arith.constant 0 : i32
    %c0_i32_0 = arith.constant 0 : i32
    return %arg0, %c0_i32 : i32, i32
  }
}

</mosaic_0001>

<llo_original>
// kernel: channel_attention_forward.1
$region0: #{channel_attention_forward.1}
  #allocation0 [shape = 'u32[]', space=smem, size = 0x4, offset = 0x4, fixed_abs, tag = 'smem constant byte address 0x4 - core index']
  #allocation1 [shape = 'u32[144,128]{1,0:T(1,128)}', space=vmem, size = 0x12000, scoped, tag = 'internal scratch']
  #allocation2 [shape = 'f32[64,128]{1,0:T(8,128)}', space=vmem, size = 0x8000, scoped, tag = 'scratch operand']
  %s0 = inlined_call_operand.vmem [shape: f32[128,4913], index: 0, kind: input, shape index: {}]
  %s1 = inlined_call_operand.vmem [shape: f32[128,1], index: 1, kind: output, shape index: {}]
  %s2 = sld [smem:[#allocation0]]
  $region115: #{channel_attention_forward.1} parent=0
    _
  %s4 = ssub.s32 1, %s2
  %s5 = scalar_select 0, %s4, %s2
  $region1: #{channel_attention_forward.1} parent=0
    #allocation3 [shape = 'u8[2097152]{0}', space=vmem, size = 0x200000, scoped, tag = 'input window, operand 0']
    loop: start=0, step=1, limit=6
    $region2: #{channel_attention_forward.1} parent=1 // loop_pre_header
      _
    $region3: #{channel_attention_forward.1} parent=1 // loop_header
      %s7 = sphi 0, %s11
      %p8 = scmp.ge.s32.totalorder %s7, 6
      %s14 = sphi 0, %s26
      %s15 = sphi 0, %s22
      %s16 = sphi 0, %s14
      %s17 = sphi 0, %s15
      %s18 = sphi 0, %s16
      %s19 = sphi 0, %s17
      %s31 = sphi 0, %s33
      %s34 = sphi 0, %s31
      %s35 = sphi 0, %s34
      %s51 = sphi 0, %s35
      %s57 = sphi 0, %s59
      %s60 = sphi 0, %s57
      %s61 = sphi 0, %s60
      %s77 = sphi 0, %s61
    $region4: #{channel_attention_forward.1} parent=1 // loop_header_branch
      %10 = sbr.rel (%p8) target = $region8
    $region5: #{channel_attention_forward.1} parent=1 // loop_body
      %s12 = ssub.s32 %s7, 1
      %s13 = ssub.s32 %s7, 2
      %s20 = sadd.s32 1, %s15
      %p21 = scmp.ge.s32.totalorder %s20, 2
      %s22 = scalar_select %p21, 0, %s20
      %s23 = sadd.s32 1, %s14
      %s24 = scalar_select %p21, %s23, %s14
      %p25 = scmp.ge.s32.totalorder %s24, 2
      %s26 = scalar_select %p25, 0, %s24
      %s27 = ssub.s32 %s14, %s26
      %s28 = ssub.s32 %s15, %s22
      %s29 = sor.u32 %s27, %s28
      %p30 = scmp.eq.s32.totalorder %s29, 0
      %s32 = sadd.s32 %s31, 1
      %s33 = scalar_select %p30, %s31, %s32
      %p36 = pneg %p30
      %p37 = scmp.eq.s32.totalorder %s7, 3
      %p38 = por %p36, %p37
      %p39 = scmp.ne.s32.totalorder %s31, %s34
      %p40 = scmp.eq.s32.totalorder %s7, 0
      %p41 = por %p39, %p40
      %p42 = scmp.ne.s32.totalorder %s31, %s34
      %p43 = scmp.eq.s32.totalorder %s12, 3
      %p44 = por %p42, %p43
      %p45 = scmp.ne.s32.totalorder %s34, %s35
      %p46 = scmp.eq.s32.totalorder %s12, 0
      %p47 = por %p45, %p46
      %p48 = scmp.ne.s32.totalorder %s34, %s35
      %p49 = scmp.eq.s32.totalorder %s13, 3
      %p50 = por %p48, %p49
      %p52 = scmp.ne.s32.totalorder %s35, %s51
      %p53 = scmp.eq.s32.totalorder %s13, 0
      %p54 = por %p52, %p53
      %s55 = ssub.s32 %s14, %s26
      %p56 = scmp.eq.s32.totalorder %s55, 0
      %s58 = sadd.s32 %s57, 1
      %s59 = scalar_select %p56, %s57, %s58
      %p62 = pneg %p56
      %p63 = scmp.eq.s32.totalorder %s7, 3
      %p64 = por %p62, %p63
      %p65 = scmp.ne.s32.totalorder %s57, %s60
      %p66 = scmp.eq.s32.totalorder %s7, 0
      %p67 = por %p65, %p66
      %p68 = scmp.ne.s32.totalorder %s57, %s60
      %p69 = scmp.eq.s32.totalorder %s12, 3
      %p70 = por %p68, %p69
      %p71 = scmp.ne.s32.totalorder %s60, %s61
      %p72 = scmp.eq.s32.totalorder %s12, 0
      %p73 = por %p71, %p72
      %p74 = scmp.ne.s32.totalorder %s60, %s61
      %p75 = scmp.eq.s32.totalorder %s13, 3
      %p76 = por %p74, %p75
      %p78 = scmp.ne.s32.totalorder %s61, %s77
      %p79 = scmp.eq.s32.totalorder %s13, 0
      %p80 = por %p78, %p79
      %p81 = scmp.le.s32.totalorder 1, %s7
      %p82 = scmp.lt.s32.totalorder %s7, 5
      %p83 = pnand %p81, %p82
      %p84 = pneg %p83
      // Predicated region
      $region9: #{channel_attention_forward.1} parent=5 // pred_check
        _
      $region10: #{channel_attention_forward.1} parent=5 // pred_check_branch
        %86 = sbr.rel (%p83) target = $region12
      $region11: #{channel_attention_forward.1} parent=5 // pred_region
        %s87 = ssub.s32 %s7, 1
      $region12: #{channel_attention_forward.1} parent=5 // pred_fallthru
        _
      %p88 = scmp.lt.s32.totalorder %s7, 4
      // Predicated region
      $region13: #{channel_attention_forward.1} parent=5 // pred_check
        %p89 = pneg %p88
      $region14: #{channel_attention_forward.1} parent=5 // pred_check_branch
        %91 = sbr.rel (%p89) target = $region16
      $region15: #{channel_attention_forward.1} parent=5 // pred_region
        // Predicated region
        $region17: #{channel_attention_forward.1} parent=15 // pred_check
          %p92 = pneg %p41
        $region18: #{channel_attention_forward.1} parent=15 // pred_check_branch
          %94 = sbr.rel (%p92) target = $region20
        $region19: #{channel_attention_forward.1} parent=15 // pred_region
          %s95 = sand.u32 %s31, 1
          %s96 = sand.u32 %s31, 1
          %s97 = smul.addr %s96, 2048
          %s98 = scalar_lea.vmem [#allocation3], %s97
          %s99 = smul.u32 8, %s14
          %s100 = smul.u32 32, %s15
          %s101 = ssub.s32 39, %s100
          %p102 = scmp.lt.s32.totalorder %s101, 32
          %s103 = scalar_select %p102, %s101, 32
          %s104 = smul.u32 1024, %s103
          %p105 = scmp.ne.s32.totalorder 0, %s104
          %s106 = smul.addr %s99, 39
          %s107 = sadd.s32 %s100, %s106
          %s108 = smul.addr %s107, 8
          %s109 = scalar_lea.vmem %s0, %s108
          %s110 = smul.u32 %s103, 8
          // Predicated region
          $region21: #{channel_attention_forward.1} parent=19 // pred_check
            %p111 = pneg %p105
          $region22: #{channel_attention_forward.1} parent=19 // pred_check_branch
            %113 = sbr.rel (%p111) target = $region24
          $region23: #{channel_attention_forward.1} parent=19 // pred_region
            %p114 = scmp.lt.u32.totalorder %s110, 8
            %p115 = pneg %p114
            // Predicated region
            $region25: #{channel_attention_forward.1} parent=23 // pred_check
              _
            $region26: #{channel_attention_forward.1} parent=23 // pred_check_branch
              %117 = sbr.rel (%p114) target = $region28
            $region27: #{channel_attention_forward.1} parent=23 // pred_region
              %s146 = sand.u32 %s110, 7
              %p147 = scmp.eq.s32.totalorder %s146, 0
              // Predicated region
              $region40: #{channel_attention_forward.1} parent=27 // pred_check
                %p148 = pneg %p147
              $region41: #{channel_attention_forward.1} parent=27 // pred_check_branch
                %150 = sbr.rel (%p148) target = $region43
              $region42: #{channel_attention_forward.1} parent=27 // pred_region
                %s151 = sshrl.u32 %s110, 3
                %s152 = sshrl.u32 %s151, 3
                // While loop
                $region44: #{channel_attention_forward.1} parent=42 // loop_pre_header
                  _
                $region45: #{channel_attention_forward.1} parent=42 // loop_header
                  %s156 = sphi 0, %s158
                  %p157 = scmp.ge.s32.totalorder %s156, %s152
                  %s161 = sphi 0, %s294
                  %s162 = sphi %s109, %s297
                  %s163 = sphi %s98, %s298
                $region46: #{channel_attention_forward.1} parent=42 // loop_header_branch
                  %160 = sbr.rel (%p157) target = $region50
                $region47: #{channel_attention_forward.1} parent=42 // loop_body
                  %v164 = vld [vmem:[%s162] sm:$0xff]
                  %165 = vst [vmem:[%s163] sm:$0xff] %v164
                  %v166 = vld [vmem:[%s162 + $0x8] sm:$0xff]
                  %167 = vst [vmem:[%s163 + $0x8] sm:$0xff] %v166
                  %v168 = vld [vmem:[%s162 + $0x10] sm:$0xff]
                  %169 = vst [vmem:[%s163 + $0x10] sm:$0xff] %v168
                  %v170 = vld [vmem:[%s162 + $0x18] sm:$0xff]
                  %171 = vst [vmem:[%s163 + $0x18] sm:$0xff] %v170
                  %v172 = vld [vmem:[%s162 + $0x20] sm:$0xff]
                  %173 = vst [vmem:[%s163 + $0x20] sm:$0xff] %v172
                  %v174 = vld [vmem:[%s162 + $0x28] sm:$0xff]
                  %175 = vst [vmem:[%s163 + $0x28] sm:$0xff] %v174
                  %v176 = vld [vmem:[%s162 + $0x30] sm:$0xff]
                  %177 = vst [vmem:[%s163 + $0x30] sm:$0xff] %v176
                  %v178 = vld [vmem:[%s162 + $0x38] sm:$0xff]
                  %179 = vst [vmem:[%s163 + $0x38] sm:$0xff] %v178
                  %v180 = vld [vmem:[%s162 + $0x138] sm:$0xff]
                  %181 = vst [vmem:[%s163 + $0x100] sm:$0xff] %v180
                  %v182 = vld [vmem:[%s162 + $0x140] sm:$0xff]
                  %183 = vst [vmem:[%s163 + $0x108] sm:$0xff] %v182
                  %v184 = vld [vmem:[%s162 + $0x148] sm:$0xff]
                  %185 = vst [vmem:[%s163 + $0x110] sm:$0xff] %v184
                  %v186 = vld [vmem:[%s162 + $0x150] sm:$0xff]
                  %187 = vst [vmem:[%s163 + $0x118] sm:$0xff] %v186
                  %v188 = vld [vmem:[%s162 + $0x158] sm:$0xff]
                  %189 = vst [vmem:[%s163 + $0x120] sm:$0xff] %v188
                  %v190 = vld [vmem:[%s162 + $0x160] sm:$0xff]
                  %191 = vst [vmem:[%s163 + $0x128] sm:$0xff] %v190
                  %v192 = vld [vmem:[%s162 + $0x168] sm:$0xff]
                  %193 = vst [vmem:[%s163 + $0x130] sm:$0xff] %v192
                  %v194 = vld [vmem:[%s162 + $0x170] sm:$0xff]
                  %195 = vst [vmem:[%s163 + $0x138] sm:$0xff] %v194
                  %v196 = vld [vmem:[%s162 + $0x270] sm:$0xff]
                  %197 = vst [vmem:[%s163 + $0x200] sm:$0xff] %v196
                  %v198 = vld [vmem:[%s162 + $0x278] sm:$0xff]
                  %199 = vst [vmem:[%s163 + $0x208] sm:$0xff] %v198
                  %v200 = vld [vmem:[%s162 + $0x280] sm:$0xff]
                  %201 = vst [vmem:[%s163 + $0x210] sm:$0xff] %v200
                  %v202 = vld [vmem:[%s162 + $0x288] sm:$0xff]
                  %203 = vst [vmem:[%s163 + $0x218] sm:$0xff] %v202
                  %v204 = vld [vmem:[%s162 + $0x290] sm:$0xff]
                  %205 = vst [vmem:[%s163 + $0x220] sm:$0xff] %v204
                  %v206 = vld [vmem:[%s162 + $0x298] sm:$0xff]
                  %207 = vst [vmem:[%s163 + $0x228] sm:$0xff] %v206
                  %v208 = vld [vmem:[%s162 + $0x2a0] sm:$0xff]
                  %209 = vst [vmem:[%s163 + $0x230] sm:$0xff] %v208
                  %v210 = vld [vmem:[%s162 + $0x2a8] sm:$0xff]
                  %211 = vst [vmem:[%s163 + $0x238] sm:$0xff] %v210
                  %v212 = vld [vmem:[%s162 + $0x3a8] sm:$0xff]
                  %213 = vst [vmem:[%s163 + $0x300] sm:$0xff] %v212
                  %v214 = vld [vmem:[%s162 + $0x3b0] sm:$0xff]
                  %215 = vst [vmem:[%s163 + $0x308] sm:$0xff] %v214
                  %v216 = vld [vmem:[%s162 + $0x3b8] sm:$0xff]
                  %217 = vst [vmem:[%s163 + $0x310] sm:$0xff] %v216
                  %v218 = vld [vmem:[%s162 + $0x3c0] sm:$0xff]
                  %219 = vst [vmem:[%s163 + $0x318] sm:$0xff] %v218
                  %v220 = vld [vmem:[%s162 + $0x3c8] sm:$0xff]
                  %221 = vst [vmem:[%s163 + $0x320] sm:$0xff] %v220
                  %v222 = vld [vmem:[%s162 + $0x3d0] sm:$0xff]
                  %223 = vst [vmem:[%s163 + $0x328] sm:$0xff] %v222
                  %v224 = vld [vmem:[%s162 + $0x3d8] sm:$0xff]
                  %225 = vst [vmem:[%s163 + $0x330] sm:$0xff] %v224
                  %v226 = vld [vmem:[%s162 + $0x3e0] sm:$0xff]
                  %227 = vst [vmem:[%s163 + $0x338] sm:$0xff] %v226
                  %v228 = vld [vmem:[%s162 + $0x4e0] sm:$0xff]
                  %229 = vst [vmem:[%s163 + $0x400] sm:$0xff] %v228
                  %v230 = vld [vmem:[%s162 + $0x4e8] sm:$0xff]
                  %231 = vst [vmem:[%s163 + $0x408] sm:$0xff] %v230
                  %v232 = vld [vmem:[%s162 + $0x4f0] sm:$0xff]
                  %233 = vst [vmem:[%s163 + $0x410] sm:$0xff] %v232
                  %v234 = vld [vmem:[%s162 + $0x4f8] sm:$0xff]
                  %235 = vst [vmem:[%s163 + $0x418] sm:$0xff] %v234
                  %v236 = vld [vmem:[%s162 + $0x500] sm:$0xff]
                  %237 = vst [vmem:[%s163 + $0x420] sm:$0xff] %v236
                  %v238 = vld [vmem:[%s162 + $0x508] sm:$0xff]
                  %239 = vst [vmem:[%s163 + $0x428] sm:$0xff] %v238
                  %v240 = vld [vmem:[%s162 + $0x510] sm:$0xff]
                  %241 = vst [vmem:[%s163 + $0x430] sm:$0xff] %v240
                  %v242 = vld [vmem:[%s162 + $0x518] sm:$0xff]
                  %243 = vst [vmem:[%s163 + $0x438] sm:$0xff] %v242
                  %v244 = vld [vmem:[%s162 + $0x618] sm:$0xff]
                  %245 = vst [vmem:[%s163 + $0x500] sm:$0xff] %v244
                  %v246 = vld [vmem:[%s162 + $0x620] sm:$0xff]
                  %247 = vst [vmem:[%s163 + $0x508] sm:$0xff] %v246
                  %v248 = vld [vmem:[%s162 + $0x628] sm:$0xff]
                  %249 = vst [vmem:[%s163 + $0x510] sm:$0xff] %v248
                  %v250 = vld [vmem:[%s162 + $0x630] sm:$0xff]
                  %251 = vst [vmem:[%s163 + $0x518] sm:$0xff] %v250
                  %v252 = vld [vmem:[%s162 + $0x638] sm:$0xff]
                  %253 = vst [vmem:[%s163 + $0x520] sm:$0xff] %v252
                  %v254 = vld [vmem:[%s162 + $0x640] sm:$0xff]
                  %255 = vst [vmem:[%s163 + $0x528] sm:$0xff] %v254
                  %v256 = vld [vmem:[%s162 + $0x648] sm:$0xff]
                  %257 = vst [vmem:[%s163 + $0x530] sm:$0xff] %v256
                  %v258 = vld [vmem:[%s162 + $0x650] sm:$0xff]
                  %259 = vst [vmem:[%s163 + $0x538] sm:$0xff] %v258
                  %v260 = vld [vmem:[%s162 + $0x750] sm:$0xff]
                  %261 = vst [vmem:[%s163 + $0x600] sm:$0xff] %v260
                  %v262 = vld [vmem:[%s162 + $0x758] sm:$0xff]
                  %263 = vst [vmem:[%s163 + $0x608] sm:$0xff] %v262
                  %v264 = vld [vmem:[%s162 + $0x760] sm:$0xff]
                  %265 = vst [vmem:[%s163 + $0x610] sm:$0xff] %v264
                  %v266 = vld [vmem:[%s162 + $0x768] sm:$0xff]
                  %267 = vst [vmem:[%s163 + $0x618] sm:$0xff] %v266
                  %v268 = vld [vmem:[%s162 + $0x770] sm:$0xff]
                  %269 = vst [vmem:[%s163 + $0x620] sm:$0xff] %v268
                  %v270 = vld [vmem:[%s162 + $0x778] sm:$0xff]
                  %271 = vst [vmem:[%s163 + $0x628] sm:$0xff] %v270
                  %v272 = vld [vmem:[%s162 + $0x780] sm:$0xff]
                  %273 = vst [vmem:[%s163 + $0x630] sm:$0xff] %v272
                  %v274 = vld [vmem:[%s162 + $0x788] sm:$0xff]
                  %275 = vst [vmem:[%s163 + $0x638] sm:$0xff] %v274
                  %v276 = vld [vmem:[%s162 + $0x888] sm:$0xff]
                  %277 = vst [vmem:[%s163 + $0x700] sm:$0xff] %v276
                  %v278 = vld [vmem:[%s162 + $0x890] sm:$0xff]
                  %279 = vst [vmem:[%s163 + $0x708] sm:$0xff] %v278
                  %v280 = vld [vmem:[%s162 + $0x898] sm:$0xff]
                  %281 = vst [vmem:[%s163 + $0x710] sm:$0xff] %v280
                  %v282 = vld [vmem:[%s162 + $0x8a0] sm:$0xff]
                  %283 = vst [vmem:[%s163 + $0x718] sm:$0xff] %v282
                  %v284 = vld [vmem:[%s162 + $0x8a8] sm:$0xff]
                  %285 = vst [vmem:[%s163 + $0x720] sm:$0xff] %v284
                  %v286 = vld [vmem:[%s162 + $0x8b0] sm:$0xff]
                  %287 = vst [vmem:[%s163 + $0x728] sm:$0xff] %v286
                  %v288 = vld [vmem:[%s162 + $0x8b8] sm:$0xff]
                  %289 = vst [vmem:[%s163 + $0x730] sm:$0xff] %v288
                  %v290 = vld [vmem:[%s162 + $0x8c0] sm:$0xff]
                  %291 = vst [vmem:[%s163 + $0x738] sm:$0xff] %v290
                  %s292 = sadd.s32 1, %s161
                  %p293 = scmp.ge.s32.totalorder %s292, %s152
                  %s294 = scalar_select %p293, 0, %s292
                  %s295 = smul.u32 %s294, 64
                  %s296 = smul.u32 %s294, 64
                  %s297 = scalar_lea.vmem %s109, %s295
                  %s298 = scalar_lea.vmem %s98, %s296 [#allocation3]
                $region48: #{channel_attention_forward.1} parent=42 // loop_footer
                  %s158 = sadd.s32 %s156, 1
                $region49: #{channel_attention_forward.1} parent=42 // loop_footer_branch
                  %155 = sbr.rel target = $region45
                $region50: #{channel_attention_forward.1} parent=42 // loop_exit
                  _
                %s299 = sshrl.u32 %s151, 3
                %s300 = sand.u32 %s151, 7
                %s301 = smul.u32 %s299, 8
                %s302 = smul.u32 128, %s301
                %s303 = sshra.s32 %s302, 4
                %s304 = scalar_lea.vmem %s109, %s303
                %s305 = smul.u32 128, %s301
                %s306 = sshra.s32 %s305, 4
                %s307 = scalar_lea.vmem %s98, %s306 [#allocation3]
                // While loop
                $region51: #{channel_attention_forward.1} parent=42 // loop_pre_header
                  _
                $region52: #{channel_attention_forward.1} parent=42 // loop_header
                  %s311 = sphi 0, %s313
                  %p312 = scmp.ge.s32.totalorder %s311, %s300
                  %s316 = sphi 0, %s337
                  %s317 = sphi %s304, %s340
                  %s318 = sphi %s307, %s341
                $region53: #{channel_attention_forward.1} parent=42 // loop_header_branch
                  %315 = sbr.rel (%p312) target = $region57
                $region54: #{channel_attention_forward.1} parent=42 // loop_body
                  %v319 = vld [vmem:[%s317] sm:$0xff]
                  %320 = vst [vmem:[%s318] sm:$0xff] %v319
                  %v321 = vld [vmem:[%s317 + $0x138] sm:$0xff]
                  %322 = vst [vmem:[%s318 + $0x100] sm:$0xff] %v321
                  %v323 = vld [vmem:[%s317 + $0x270] sm:$0xff]
                  %324 = vst [vmem:[%s318 + $0x200] sm:$0xff] %v323
                  %v325 = vld [vmem:[%s317 + $0x3a8] sm:$0xff]
                  %326 = vst [vmem:[%s318 + $0x300] sm:$0xff] %v325
                  %v327 = vld [vmem:[%s317 + $0x4e0] sm:$0xff]
                  %328 = vst [vmem:[%s318 + $0x400] sm:$0xff] %v327
                  %v329 = vld [vmem:[%s317 + $0x618] sm:$0xff]
                  %330 = vst [vmem:[%s318 + $0x500] sm:$0xff] %v329
                  %v331 = vld [vmem:[%s317 + $0x750] sm:$0xff]
                  %332 = vst [vmem:[%s318 + $0x600] sm:$0xff] %v331
                  %v333 = vld [vmem:[%s317 + $0x888] sm:$0xff]
                  %334 = vst [vmem:[%s318 + $0x700] sm:$0xff] %v333
                  %s335 = sadd.s32 1, %s316
                  %p336 = scmp.ge.s32.totalorder %s335, %s300
                  %s337 = scalar_select %p336, 0, %s335
                  %s338 = smul.u32 %s337, 8
                  %s339 = smul.u32 %s337, 8
                  %s340 = scalar_lea.vmem %s304, %s338
                  %s341 = scalar_lea.vmem %s307, %s339 [#allocation3]
                $region55: #{channel_attention_forward.1} parent=42 // loop_footer
                  %s313 = sadd.s32 %s311, 1
                $region56: #{channel_attention_forward.1} parent=42 // loop_footer_branch
                  %310 = sbr.rel target = $region52
                $region57: #{channel_attention_forward.1} parent=42 // loop_exit
                  _
              $region43: #{channel_attention_forward.1} parent=27 // pred_fallthru
                _
              %p342 = pneg %p147
              // Predicated region
              $region58: #{channel_attention_forward.1} parent=27 // pred_check
                _
              $region59: #{channel_attention_forward.1} parent=27 // pred_check_branch
                %344 = sbr.rel (%p147) target = $region61
              $region60: #{channel_attention_forward.1} parent=27 // pred_region
                %s345 = sand.u32 %s110, 7
                %s346 = ssub.s32 %s110, %s345
                %s347 = scalar_lea.vmem %s109, %s346
                %s348 = ssub.s32 %s110, %s345
                %s349 = scalar_lea.vmem %s98, %s348 [#allocation3]
                %s350 = sshrl.u32 %s110, 3
                %s351 = sshrl.u32 %s350, 3
                // While loop
                $region62: #{channel_attention_forward.1} parent=60 // loop_pre_header
                  _
                $region63: #{channel_attention_forward.1} parent=60 // loop_header
                  %s355 = sphi 0, %s357
                  %p356 = scmp.ge.s32.totalorder %s355, %s351
                  %s360 = sphi 0, %s493
                  %s361 = sphi %s109, %s496
                  %s362 = sphi %s98, %s497
                $region64: #{channel_attention_forward.1} parent=60 // loop_header_branch
                  %359 = sbr.rel (%p356) target = $region68
                $region65: #{channel_attention_forward.1} parent=60 // loop_body
                  %v363 = vld [vmem:[%s361] sm:$0xff]
                  %364 = vst [vmem:[%s362] sm:$0xff] %v363
                  %v365 = vld [vmem:[%s361 + $0x8] sm:$0xff]
                  %366 = vst [vmem:[%s362 + $0x8] sm:$0xff] %v365
                  %v367 = vld [vmem:[%s361 + $0x10] sm:$0xff]
                  %368 = vst [vmem:[%s362 + $0x10] sm:$0xff] %v367
                  %v369 = vld [vmem:[%s361 + $0x18] sm:$0xff]
                  %370 = vst [vmem:[%s362 + $0x18] sm:$0xff] %v369
                  %v371 = vld [vmem:[%s361 + $0x20] sm:$0xff]
                  %372 = vst [vmem:[%s362 + $0x20] sm:$0xff] %v371
                  %v373 = vld [vmem:[%s361 + $0x28] sm:$0xff]
                  %374 = vst [vmem:[%s362 + $0x28] sm:$0xff] %v373
                  %v375 = vld [vmem:[%s361 + $0x30] sm:$0xff]
                  %376 = vst [vmem:[%s362 + $0x30] sm:$0xff] %v375
                  %v377 = vld [vmem:[%s361 + $0x38] sm:$0xff]
                  %378 = vst [vmem:[%s362 + $0x38] sm:$0xff] %v377
                  %v379 = vld [vmem:[%s361 + $0x138] sm:$0xff]
                  %380 = vst [vmem:[%s362 + $0x100] sm:$0xff] %v379
                  %v381 = vld [vmem:[%s361 + $0x140] sm:$0xff]
                  %382 = vst [vmem:[%s362 + $0x108] sm:$0xff] %v381
                  %v383 = vld [vmem:[%s361 + $0x148] sm:$0xff]
                  %384 = vst [vmem:[%s362 + $0x110] sm:$0xff] %v383
                  %v385 = vld [vmem:[%s361 + $0x150] sm:$0xff]
                  %386 = vst [vmem:[%s362 + $0x118] sm:$0xff] %v385
                  %v387 = vld [vmem:[%s361 + $0x158] sm:$0xff]
                  %388 = vst [vmem:[%s362 + $0x120] sm:$0xff] %v387
                  %v389 = vld [vmem:[%s361 + $0x160] sm:$0xff]
                  %390 = vst [vmem:[%s362 + $0x128] sm:$0xff] %v389
                  %v391 = vld [vmem:[%s361 + $0x168] sm:$0xff]
                  %392 = vst [vmem:[%s362 + $0x130] sm:$0xff] %v391
                  %v393 = vld [vmem:[%s361 + $0x170] sm:$0xff]
                  %394 = vst [vmem:[%s362 + $0x138] sm:$0xff] %v393
                  %v395 = vld [vmem:[%s361 + $0x270] sm:$0xff]
                  %396 = vst [vmem:[%s362 + $0x200] sm:$0xff] %v395
                  %v397 = vld [vmem:[%s361 + $0x278] sm:$0xff]
                  %398 = vst [vmem:[%s362 + $0x208] sm:$0xff] %v397
                  %v399 = vld [vmem:[%s361 + $0x280] sm:$0xff]
                  %400 = vst [vmem:[%s362 + $0x210] sm:$0xff] %v399
                  %v401 = vld [vmem:[%s361 + $0x288] sm:$0xff]
                  %402 = vst [vmem:[%s362 + $0x218] sm:$0xff] %v401
                  %v403 = vld [vmem:[%s361 + $0x290] sm:$0xff]
                  %404 = vst [vmem:[%s362 + $0x220] sm:$0xff] %v403
                  %v405 = vld [vmem:[%s361 + $0x298] sm:$0xff]
                  %406 = vst [vmem:[%s362 + $0x228] sm:$0xff] %v405
                  %v407 = vld [vmem:[%s361 + $0x2a0] sm:$0xff]
                  %408 = vst [vmem:[%s362 + $0x230] sm:$0xff] %v407
                  %v409 = vld [vmem:[%s361 + $0x2a8] sm:$0xff]
                  %410 = vst [vmem:[%s362 + $0x238] sm:$0xff] %v409
                  %v411 = vld [vmem:[%s361 + $0x3a8] sm:$0xff]
                  %412 = vst [vmem:[%s362 + $0x300] sm:$0xff] %v411
                  %v413 = vld [vmem:[%s361 + $0x3b0] sm:$0xff]
                  %414 = vst [vmem:[%s362 + $0x308] sm:$0xff] %v413
                  %v415 = vld [vmem:[%s361 + $0x3b8] sm:$0xff]
                  %416 = vst [vmem:[%s362 + $0x310] sm:$0xff] %v415
                  %v417 = vld [vmem:[%s361 + $0x3c0] sm:$0xff]
                  %418 = vst [vmem:[%s362 + $0x318] sm:$0xff] %v417
                  %v419 = vld [vmem:[%s361 + $0x3c8] sm:$0xff]
                  %420 = vst [vmem:[%s362 + $0x320] sm:$0xff] %v419
                  %v421 = vld [vmem:[%s361 + $0x3d0] sm:$0xff]
                  %422 = vst [vmem:[%s362 + $0x328] sm:$0xff] %v421
                  %v423 = vld [vmem:[%s361 + $0x3d8] sm:$0xff]
                  %424 = vst [vmem:[%s362 + $0x330] sm:$0xff] %v423
                  %v425 = vld [vmem:[%s361 + $0x3e0] sm:$0xff]
                  %426 = vst [vmem:[%s362 + $0x338] sm:$0xff] %v425
                  %v427 = vld [vmem:[%s361 + $0x4e0] sm:$0xff]
                  %428 = vst [vmem:[%s362 + $0x400] sm:$0xff] %v427
                  %v429 = vld [vmem:[%s361 + $0x4e8] sm:$0xff]
                  %430 = vst [vmem:[%s362 + $0x408] sm:$0xff] %v429
                  %v431 = vld [vmem:[%s361 + $0x4f0] sm:$0xff]
                  %432 = vst [vmem:[%s362 + $0x410] sm:$0xff] %v431
                  %v433 = vld [vmem:[%s361 + $0x4f8] sm:$0xff]
                  %434 = vst [vmem:[%s362 + $0x418] sm:$0xff] %v433
                  %v435 = vld [vmem:[%s361 + $0x500] sm:$0xff]
                  %436 = vst [vmem:[%s362 + $0x420] sm:$0xff] %v435
                  %v437 = vld [vmem:[%s361 + $0x508] sm:$0xff]
                  %438 = vst [vmem:[%s362 + $0x428] sm:$0xff] %v437
                  %v439 = vld [vmem:[%s361 + $0x510] sm:$0xff]
                  %440 = vst [vmem:[%s362 + $0x430] sm:$0xff] %v439
                  %v441 = vld [vmem:[%s361 + $0x518] sm:$0xff]
                  %442 = vst [vmem:[%s362 + $0x438] sm:$0xff] %v441
                  %v443 = vld [vmem:[%s361 + $0x618] sm:$0xff]
                  %444 = vst [vmem:[%s362 + $0x500] sm:$0xff] %v443
                  %v445 = vld [vmem:[%s361 + $0x620] sm:$0xff]
                  %446 = vst [vmem:[%s362 + $0x508] sm:$0xff] %v445
                  %v447 = vld [vmem:[%s361 + $0x628] sm:$0xff]
                  %448 = vst [vmem:[%s362 + $0x510] sm:$0xff] %v447
                  %v449 = vld [vmem:[%s361 + $0x630] sm:$0xff]
                  %450 = vst [vmem:[%s362 + $0x518] sm:$0xff] %v449
                  %v451 = vld [vmem:[%s361 + $0x638] sm:$0xff]
                  %452 = vst [vmem:[%s362 + $0x520] sm:$0xff] %v451
                  %v453 = vld [vmem:[%s361 + $0x640] sm:$0xff]
                  %454 = vst [vmem:[%s362 + $0x528] sm:$0xff] %v453
                  %v455 = vld [vmem:[%s361 + $0x648] sm:$0xff]
                  %456 = vst [vmem:[%s362 + $0x530] sm:$0xff] %v455
                  %v457 = vld [vmem:[%s361 + $0x650] sm:$0xff]
                  %458 = vst [vmem:[%s362 + $0x538] sm:$0xff] %v457
                  %v459 = vld [vmem:[%s361 + $0x750] sm:$0xff]
                  %460 = vst [vmem:[%s362 + $0x600] sm:$0xff] %v459
                  %v461 = vld [vmem:[%s361 + $0x758] sm:$0xff]
                  %462 = vst [vmem:[%s362 + $0x608] sm:$0xff] %v461
                  %v463 = vld [vmem:[%s361 + $0x760] sm:$0xff]
                  %464 = vst [vmem:[%s362 + $0x610] sm:$0xff] %v463
                  %v465 = vld [vmem:[%s361 + $0x768] sm:$0xff]
                  %466 = vst [vmem:[%s362 + $0x618] sm:$0xff] %v465
                  %v467 = vld [vmem:[%s361 + $0x770] sm:$0xff]
                  %468 = vst [vmem:[%s362 + $0x620] sm:$0xff] %v467
                  %v469 = vld [vmem:[%s361 + $0x778] sm:$0xff]
                  %470 = vst [vmem:[%s362 + $0x628] sm:$0xff] %v469
                  %v471 = vld [vmem:[%s361 + $0x780] sm:$0xff]
                  %472 = vst [vmem:[%s362 + $0x630] sm:$0xff] %v471
                  %v473 = vld [vmem:[%s361 + $0x788] sm:$0xff]
                  %474 = vst [vmem:[%s362 + $0x638] sm:$0xff] %v473
                  %v475 = vld [vmem:[%s361 + $0x888] sm:$0xff]
                  %476 = vst [vmem:[%s362 + $0x700] sm:$0xff] %v475
                  %v477 = vld [vmem:[%s361 + $0x890] sm:$0xff]
                  %478 = vst [vmem:[%s362 + $0x708] sm:$0xff] %v477
                  %v479 = vld [vmem:[%s361 + $0x898] sm:$0xff]
                  %480 = vst [vmem:[%s362 + $0x710] sm:$0xff] %v479
                  %v481 = vld [vmem:[%s361 + $0x8a0] sm:$0xff]
                  %482 = vst [vmem:[%s362 + $0x718] sm:$0xff] %v481
                  %v483 = vld [vmem:[%s361 + $0x8a8] sm:$0xff]
                  %484 = vst [vmem:[%s362 + $0x720] sm:$0xff] %v483
                  %v485 = vld [vmem:[%s361 + $0x8b0] sm:$0xff]
                  %486 = vst [vmem:[%s362 + $0x728] sm:$0xff] %v485
                  %v487 = vld [vmem:[%s361 + $0x8b8] sm:$0xff]
                  %488 = vst [vmem:[%s362 + $0x730] sm:$0xff] %v487
                  %v489 = vld [vmem:[%s361 + $0x8c0] sm:$0xff]
                  %490 = vst [vmem:[%s362 + $0x738] sm:$0xff] %v489
                  %s491 = sadd.s32 1, %s360
                  %p492 = scmp.ge.s32.totalorder %s491, %s351
                  %s493 = scalar_select %p492, 0, %s491
                  %s494 = smul.u32 %s493, 64
                  %s495 = smul.u32 %s493, 64
                  %s496 = scalar_lea.vmem %s109, %s494
                  %s497 = scalar_lea.vmem %s98, %s495 [#allocation3]
                $region66: #{channel_attention_forward.1} parent=60 // loop_footer
                  %s357 = sadd.s32 %s355, 1
                $region67: #{channel_attention_forward.1} parent=60 // loop_footer_branch
                  %354 = sbr.rel target = $region63
                $region68: #{channel_attention_forward.1} parent=60 // loop_exit
                  _
                %s498 = sshrl.u32 %s350, 3
                %s499 = sand.u32 %s350, 7
                %s500 = smul.u32 %s498, 8
                %s501 = smul.u32 128, %s500
                %s502 = sshra.s32 %s501, 4
                %s503 = scalar_lea.vmem %s109, %s502
                %s504 = smul.u32 128, %s500
                %s505 = sshra.s32 %s504, 4
                %s506 = scalar_lea.vmem %s98, %s505 [#allocation3]
                // While loop
                $region69: #{channel_attention_forward.1} parent=60 // loop_pre_header
                  _
                $region70: #{channel_attention_forward.1} parent=60 // loop_header
                  %s510 = sphi 0, %s512
                  %p511 = scmp.ge.s32.totalorder %s510, %s499
                  %s515 = sphi 0, %s536
                  %s516 = sphi %s503, %s539
                  %s517 = sphi %s506, %s540
                $region71: #{channel_attention_forward.1} parent=60 // loop_header_branch
                  %514 = sbr.rel (%p511) target = $region75
                $region72: #{channel_attention_forward.1} parent=60 // loop_body
                  %v518 = vld [vmem:[%s516] sm:$0xff]
                  %519 = vst [vmem:[%s517] sm:$0xff] %v518
                  %v520 = vld [vmem:[%s516 + $0x138] sm:$0xff]
                  %521 = vst [vmem:[%s517 + $0x100] sm:$0xff] %v520
                  %v522 = vld [vmem:[%s516 + $0x270] sm:$0xff]
                  %523 = vst [vmem:[%s517 + $0x200] sm:$0xff] %v522
                  %v524 = vld [vmem:[%s516 + $0x3a8] sm:$0xff]
                  %525 = vst [vmem:[%s517 + $0x300] sm:$0xff] %v524
                  %v526 = vld [vmem:[%s516 + $0x4e0] sm:$0xff]
                  %527 = vst [vmem:[%s517 + $0x400] sm:$0xff] %v526
                  %v528 = vld [vmem:[%s516 + $0x618] sm:$0xff]
                  %529 = vst [vmem:[%s517 + $0x500] sm:$0xff] %v528
                  %v530 = vld [vmem:[%s516 + $0x750] sm:$0xff]
                  %531 = vst [vmem:[%s517 + $0x600] sm:$0xff] %v530
                  %v532 = vld [vmem:[%s516 + $0x888] sm:$0xff]
                  %533 = vst [vmem:[%s517 + $0x700] sm:$0xff] %v532
                  %s534 = sadd.s32 1, %s515
                  %p535 = scmp.ge.s32.totalorder %s534, %s499
                  %s536 = scalar_select %p535, 0, %s534
                  %s537 = smul.u32 %s536, 8
                  %s538 = smul.u32 %s536, 8
                  %s539 = scalar_lea.vmem %s503, %s537
                  %s540 = scalar_lea.vmem %s506, %s538 [#allocation3]
                $region73: #{channel_attention_forward.1} parent=60 // loop_footer
                  %s512 = sadd.s32 %s510, 1
                $region74: #{channel_attention_forward.1} parent=60 // loop_footer_branch
                  %509 = sbr.rel target = $region70
                $region75: #{channel_attention_forward.1} parent=60 // loop_exit
                  _
                %s541 = sshllo.u32 0, %s345
                loop: start=0, step=1, limit=1
                $region76: #{channel_attention_forward.1} parent=60 // loop_pre_header
                  _
                $region77: #{channel_attention_forward.1} parent=60 // loop_header
                  %s543 = sphi 0, %s547
                  %p544 = scmp.ge.s32.totalorder %s543, 1
                  %s548 = sphi %s347, %s347
                  %s549 = sphi %s349, %s349
                $region78: #{channel_attention_forward.1} parent=60 // loop_header_branch
                  %546 = sbr.rel (%p544) target = $region82
                $region79: #{channel_attention_forward.1} parent=60 // loop_body
                  %v550 = vld [vmem:[%s548] sm:%s541]
                  %551 = vst [vmem:[%s549] sm:%s541] %v550
                  %v552 = vld [vmem:[%s548 + $0x138] sm:%s541]
                  %553 = vst [vmem:[%s549 + $0x100] sm:%s541] %v552
                  %v554 = vld [vmem:[%s548 + $0x270] sm:%s541]
                  %555 = vst [vmem:[%s549 + $0x200] sm:%s541] %v554
                  %v556 = vld [vmem:[%s548 + $0x3a8] sm:%s541]
                  %557 = vst [vmem:[%s549 + $0x300] sm:%s541] %v556
                  %v558 = vld [vmem:[%s548 + $0x4e0] sm:%s541]
                  %559 = vst [vmem:[%s549 + $0x400] sm:%s541] %v558
                  %v560 = vld [vmem:[%s548 + $0x618] sm:%s541]
                  %561 = vst [vmem:[%s549 + $0x500] sm:%s541] %v560
                  %v562 = vld [vmem:[%s548 + $0x750] sm:%s541]
                  %563 = vst [vmem:[%s549 + $0x600] sm:%s541] %v562
                  %v564 = vld [vmem:[%s548 + $0x888] sm:%s541]
                  %565 = vst [vmem:[%s549 + $0x700] sm:%s541] %v564
                $region80: #{channel_attention_forward.1} parent=60 // loop_footer
                  %s547 = sadd.s32 1, %s543
                $region81: #{channel_attention_forward.1} parent=60 // loop_footer_branch
                  %542 = sbr.rel target = $region77
                $region82: #{channel_attention_forward.1} parent=60 // loop_exit
                  _
              $region61: #{channel_attention_forward.1} parent=27 // pred_fallthru
                _
            $region28: #{channel_attention_forward.1} parent=23 // pred_fallthru
              _
            // Predicated region
            $region29: #{channel_attention_forward.1} parent=23 // pred_check
              %p118 = pneg %p114
            $region30: #{channel_attention_forward.1} parent=23 // pred_check_branch
              %120 = sbr.rel (%p118) target = $region32
            $region31: #{channel_attention_forward.1} parent=23 // pred_region
              %s121 = sshllo.u32 0, %s110
              loop: start=0, step=1, limit=1
              $region33: #{channel_attention_forward.1} parent=31 // loop_pre_header
                _
              $region34: #{channel_attention_forward.1} parent=31 // loop_header
                %s123 = sphi 0, %s127
                %p124 = scmp.ge.s32.totalorder %s123, 1
                %s128 = sphi %s109, %s109
                %s129 = sphi %s98, %s98
              $region35: #{channel_attention_forward.1} parent=31 // loop_header_branch
                %126 = sbr.rel (%p124) target = $region39
              $region36: #{channel_attention_forward.1} parent=31 // loop_body
                %v130 = vld [vmem:[%s128] sm:%s121]
                %131 = vst [vmem:[%s129] sm:%s121] %v130
                %v132 = vld [vmem:[%s128 + $0x138] sm:%s121]
                %133 = vst [vmem:[%s129 + $0x100] sm:%s121] %v132
                %v134 = vld [vmem:[%s128 + $0x270] sm:%s121]
                %135 = vst [vmem:[%s129 + $0x200] sm:%s121] %v134
                %v136 = vld [vmem:[%s128 + $0x3a8] sm:%s121]
                %137 = vst [vmem:[%s129 + $0x300] sm:%s121] %v136
                %v138 = vld [vmem:[%s128 + $0x4e0] sm:%s121]
                %139 = vst [vmem:[%s129 + $0x400] sm:%s121] %v138
                %v140 = vld [vmem:[%s128 + $0x618] sm:%s121]
                %141 = vst [vmem:[%s129 + $0x500] sm:%s121] %v140
                %v142 = vld [vmem:[%s128 + $0x750] sm:%s121]
                %143 = vst [vmem:[%s129 + $0x600] sm:%s121] %v142
                %v144 = vld [vmem:[%s128 + $0x888] sm:%s121]
                %145 = vst [vmem:[%s129 + $0x700] sm:%s121] %v144
              $region37: #{channel_attention_forward.1} parent=31 // loop_footer
                %s127 = sadd.s32 1, %s123
              $region38: #{channel_attention_forward.1} parent=31 // loop_footer_branch
                %122 = sbr.rel target = $region34
              $region39: #{channel_attention_forward.1} parent=31 // loop_exit
                _
            $region32: #{channel_attention_forward.1} parent=23 // pred_fallthru
              _
          $region24: #{channel_attention_forward.1} parent=19 // pred_fallthru
            _
          %566 = vnop
        $region20: #{channel_attention_forward.1} parent=15 // pred_fallthru
          _
      $region16: #{channel_attention_forward.1} parent=5 // pred_fallthru
        _
      %p567 = scmp.le.s32.totalorder 1, %s7
      %p568 = scmp.lt.s32.totalorder %s7, 5
      %p569 = pnand %p567, %p568
      %p570 = pneg %p569
      // Predicated region
      $region83: #{channel_attention_forward.1} parent=5 // pred_check
        _
      $region84: #{channel_attention_forward.1} parent=5 // pred_check_branch
        %572 = sbr.rel (%p569) target = $region86
      $region85: #{channel_attention_forward.1} parent=5 // pred_region
        %s573 = ssub.s32 %s7, 1
        %s574 = sand.u32 %s34, 1
        %s575 = sand.u32 %s34, 1
        %s576 = smul.addr %s575, 2048
        %s577 = scalar_lea.vmem [#allocation3], %s576
        // Predicated region
        $region87: #{channel_attention_forward.1} parent=85 // pred_check
          %p578 = pneg %p47
        $region88: #{channel_attention_forward.1} parent=85 // pred_check_branch
          %580 = sbr.rel (%p578) target = $region90
        $region89: #{channel_attention_forward.1} parent=85 // pred_region
          _
        $region90: #{channel_attention_forward.1} parent=85 // pred_fallthru
          _
        %s581 = sand.u32 %s34, 1
        %s582 = sand.u32 %s34, 1
        %s583 = smul.addr %s582, 2048
        %s584 = scalar_lea.vmem [#allocation3], %s583
        %p585 = pneg %p47
        %p586 = pneg %p44
        %p587 = pneg %p73
        %p588 = pneg %p70
        %s589 = smul.u32 8, %s16
        %p590 = scmp.lt.s32.totalorder %s589, 15
        %s591 = scalar_select %p590, %s589, 15
        %s592 = smul.addr %s591, 8
        %s593 = scalar_lea.vmem %s1, %s592
        %s594 = smul.u32 8, %s16
        %s595 = smul.u32 32, %s17
        %s596 = ssub.s32 39, %s595
        %p597 = scmp.lt.s32.totalorder %s596, 32
        %s598 = scalar_select %p597, %s596, 32
        %s599 = smul.u32 1024, %s598
        %s600 = smul.u32 8, %s16
        %p601 = scmp.lt.s32.totalorder %s600, 15
        %s602 = scalar_select %p601, %s600, 15
        %s603 = smul.addr %s602, 8
        %s604 = scalar_lea.vmem %s1, %s603
        %s605 = smul.u32 8, %s16
        %p606 = scmp.eq.s32.totalorder %s17, 0
        // Predicated region
        $region91: #{channel_attention_forward.1} parent=85 // pred_check
          %p607 = pneg %p606
        $region92: #{channel_attention_forward.1} parent=85 // pred_check_branch
          %609 = sbr.rel (%p607) target = $region94
        $region93: #{channel_attention_forward.1} parent=85 // pred_region
          %610 = vst [vmem:[#allocation2] sm:$0xff] 0.0
          %611 = vst [vmem:[#allocation2 + $0x8] sm:$0xff] 0.0
          %612 = vst [vmem:[#allocation2 + $0x10] sm:$0xff] 0.0
          %613 = vst [vmem:[#allocation2 + $0x18] sm:$0xff] 0.0
          %614 = vst [vmem:[#allocation2 + $0x20] sm:$0xff] 0.0
          %615 = vst [vmem:[#allocation2 + $0x28] sm:$0xff] 0.0
          %616 = vst [vmem:[#allocation2 + $0x30] sm:$0xff] 0.0
          %617 = vst [vmem:[#allocation2 + $0x38] sm:$0xff] 0.0
        $region94: #{channel_attention_forward.1} parent=85 // pred_fallthru
          _
        %p618 = scmp.lt.s32.totalorder %s17, 1
        // Predicated region
        $region95: #{channel_attention_forward.1} parent=85 // pred_check
          %p619 = pneg %p618
        $region96: #{channel_attention_forward.1} parent=85 // pred_check_branch
          %621 = sbr.rel (%p619) target = $region98
        $region97: #{channel_attention_forward.1} parent=85 // pred_region
          %v622 = vld [vmem:[#allocation2] sm:$0xff]
          %v623 = vld [vmem:[#allocation2 + $0x8] sm:$0xff]
          %v624 = vld [vmem:[#allocation2 + $0x10] sm:$0xff]
          %v625 = vld [vmem:[#allocation2 + $0x18] sm:$0xff]
          %v626 = vld [vmem:[#allocation2 + $0x20] sm:$0xff]
          %v627 = vld [vmem:[#allocation2 + $0x28] sm:$0xff]
          %v628 = vld [vmem:[#allocation2 + $0x30] sm:$0xff]
          %v629 = vld [vmem:[#allocation2 + $0x38] sm:$0xff]
          %v630 = vld [vmem:[%s577] sm:$0xff]
          %v631 = vld [vmem:[%s577 + $0x100] sm:$0xff]
          %v632 = vld [vmem:[%s577 + $0x200] sm:$0xff]
          %v633 = vld [vmem:[%s577 + $0x300] sm:$0xff]
          %v634 = vld [vmem:[%s577 + $0x400] sm:$0xff]
          %v635 = vld [vmem:[%s577 + $0x500] sm:$0xff]
          %v636 = vld [vmem:[%s577 + $0x600] sm:$0xff]
          %v637 = vld [vmem:[%s577 + $0x700] sm:$0xff]
          %v638 = vadd.f32 %v622, %v630
          %v639 = vadd.f32 %v623, %v631
          %v640 = vadd.f32 %v624, %v632
          %v641 = vadd.f32 %v625, %v633
          %v642 = vadd.f32 %v626, %v634
          %v643 = vadd.f32 %v627, %v635
          %v644 = vadd.f32 %v628, %v636
          %v645 = vadd.f32 %v629, %v637
          %v646 = vld [vmem:[%s577 + $0x8] sm:$0xff]
          %v647 = vld [vmem:[%s577 + $0x108] sm:$0xff]
          %v648 = vld [vmem:[%s577 + $0x208] sm:$0xff]
          %v649 = vld [vmem:[%s577 + $0x308] sm:$0xff]
          %v650 = vld [vmem:[%s577 + $0x408] sm:$0xff]
          %v651 = vld [vmem:[%s577 + $0x508] sm:$0xff]
          %v652 = vld [vmem:[%s577 + $0x608] sm:$0xff]
          %v653 = vld [vmem:[%s577 + $0x708] sm:$0xff]
          %v654 = vadd.f32 %v638, %v646
          %v655 = vadd.f32 %v639, %v647
          %v656 = vadd.f32 %v640, %v648
          %v657 = vadd.f32 %v641, %v649
          %v658 = vadd.f32 %v642, %v650
          %v659 = vadd.f32 %v643, %v651
          %v660 = vadd.f32 %v644, %v652
          %v661 = vadd.f32 %v645, %v653
          %v662 = vld [vmem:[%s577 + $0x10] sm:$0xff]
          %v663 = vld [vmem:[%s577 + $0x110] sm:$0xff]
          %v664 = vld [vmem:[%s577 + $0x210] sm:$0xff]
          %v665 = vld [vmem:[%s577 + $0x310] sm:$0xff]
          %v666 = vld [vmem:[%s577 + $0x410] sm:$0xff]
          %v667 = vld [vmem:[%s577 + $0x510] sm:$0xff]
          %v668 = vld [vmem:[%s577 + $0x610] sm:$0xff]
          %v669 = vld [vmem:[%s577 + $0x710] sm:$0xff]
          %v670 = vadd.f32 %v654, %v662
          %v671 = vadd.f32 %v655, %v663
          %v672 = vadd.f32 %v656, %v664
          %v673 = vadd.f32 %v657, %v665
          %v674 = vadd.f32 %v658, %v666
          %v675 = vadd.f32 %v659, %v667
          %v676 = vadd.f32 %v660, %v668
          %v677 = vadd.f32 %v661, %v669
          %v678 = vld [vmem:[%s577 + $0x18] sm:$0xff]
          %v679 = vld [vmem:[%s577 + $0x118] sm:$0xff]
          %v680 = vld [vmem:[%s577 + $0x218] sm:$0xff]
          %v681 = vld [vmem:[%s577 + $0x318] sm:$0xff]
          %v682 = vld [vmem:[%s577 + $0x418] sm:$0xff]
          %v683 = vld [vmem:[%s577 + $0x518] sm:$0xff]
          %v684 = vld [vmem:[%s577 + $0x618] sm:$0xff]
          %v685 = vld [vmem:[%s577 + $0x718] sm:$0xff]
          %v686 = vadd.f32 %v670, %v678
          %v687 = vadd.f32 %v671, %v679
          %v688 = vadd.f32 %v672, %v680
          %v689 = vadd.f32 %v673, %v681
          %v690 = vadd.f32 %v674, %v682
          %v691 = vadd.f32 %v675, %v683
          %v692 = vadd.f32 %v676, %v684
          %v693 = vadd.f32 %v677, %v685
          %v694 = vld [vmem:[%s577 + $0x20] sm:$0xff]
          %v695 = vld [vmem:[%s577 + $0x120] sm:$0xff]
          %v696 = vld [vmem:[%s577 + $0x220] sm:$0xff]
          %v697 = vld [vmem:[%s577 + $0x320] sm:$0xff]
          %v698 = vld [vmem:[%s577 + $0x420] sm:$0xff]
          %v699 = vld [vmem:[%s577 + $0x520] sm:$0xff]
          %v700 = vld [vmem:[%s577 + $0x620] sm:$0xff]
          %v701 = vld [vmem:[%s577 + $0x720] sm:$0xff]
          %v702 = vadd.f32 %v686, %v694
          %v703 = vadd.f32 %v687, %v695
          %v704 = vadd.f32 %v688, %v696
          %v705 = vadd.f32 %v689, %v697
          %v706 = vadd.f32 %v690, %v698
          %v707 = vadd.f32 %v691, %v699
          %v708 = vadd.f32 %v692, %v700
          %v709 = vadd.f32 %v693, %v701
          %v710 = vld [vmem:[%s577 + $0x28] sm:$0xff]
          %v711 = vld [vmem:[%s577 + $0x128] sm:$0xff]
          %v712 = vld [vmem:[%s577 + $0x228] sm:$0xff]
          %v713 = vld [vmem:[%s577 + $0x328] sm:$0xff]
          %v714 = vld [vmem:[%s577 + $0x428] sm:$0xff]
          %v715 = vld [vmem:[%s577 + $0x528] sm:$0xff]
          %v716 = vld [vmem:[%s577 + $0x628] sm:$0xff]
          %v717 = vld [vmem:[%s577 + $0x728] sm:$0xff]
          %v718 = vadd.f32 %v702, %v710
          %v719 = vadd.f32 %v703, %v711
          %v720 = vadd.f32 %v704, %v712
          %v721 = vadd.f32 %v705, %v713
          %v722 = vadd.f32 %v706, %v714
          %v723 = vadd.f32 %v707, %v715
          %v724 = vadd.f32 %v708, %v716
          %v725 = vadd.f32 %v709, %v717
          %v726 = vld [vmem:[%s577 + $0x30] sm:$0xff]
          %v727 = vld [vmem:[%s577 + $0x130] sm:$0xff]
          %v728 = vld [vmem:[%s577 + $0x230] sm:$0xff]
          %v729 = vld [vmem:[%s577 + $0x330] sm:$0xff]
          %v730 = vld [vmem:[%s577 + $0x430] sm:$0xff]
          %v731 = vld [vmem:[%s577 + $0x530] sm:$0xff]
          %v732 = vld [vmem:[%s577 + $0x630] sm:$0xff]
          %v733 = vld [vmem:[%s577 + $0x730] sm:$0xff]
          %v734 = vadd.f32 %v718, %v726
          %v735 = vadd.f32 %v719, %v727
          %v736 = vadd.f32 %v720, %v728
          %v737 = vadd.f32 %v721, %v729
          %v738 = vadd.f32 %v722, %v730
          %v739 = vadd.f32 %v723, %v731
          %v740 = vadd.f32 %v724, %v732
          %v741 = vadd.f32 %v725, %v733
          %v742 = vld [vmem:[%s577 + $0x38] sm:$0xff]
          %v743 = vld [vmem:[%s577 + $0x138] sm:$0xff]
          %v744 = vld [vmem:[%s577 + $0x238] sm:$0xff]
          %v745 = vld [vmem:[%s577 + $0x338] sm:$0xff]
          %v746 = vld [vmem:[%s577 + $0x438] sm:$0xff]
          %v747 = vld [vmem:[%s577 + $0x538] sm:$0xff]
          %v748 = vld [vmem:[%s577 + $0x638] sm:$0xff]
          %v749 = vld [vmem:[%s577 + $0x738] sm:$0xff]
          %v750 = vadd.f32 %v734, %v742
          %v751 = vadd.f32 %v735, %v743
          %v752 = vadd.f32 %v736, %v744
          %v753 = vadd.f32 %v737, %v745
          %v754 = vadd.f32 %v738, %v746
          %v755 = vadd.f32 %v739, %v747
          %v756 = vadd.f32 %v740, %v748
          %v757 = vadd.f32 %v741, %v749
          %v758 = vld [vmem:[%s577 + $0x40] sm:$0xff]
          %v759 = vld [vmem:[%s577 + $0x140] sm:$0xff]
          %v760 = vld [vmem:[%s577 + $0x240] sm:$0xff]
          %v761 = vld [vmem:[%s577 + $0x340] sm:$0xff]
          %v762 = vld [vmem:[%s577 + $0x440] sm:$0xff]
          %v763 = vld [vmem:[%s577 + $0x540] sm:$0xff]
          %v764 = vld [vmem:[%s577 + $0x640] sm:$0xff]
          %v765 = vld [vmem:[%s577 + $0x740] sm:$0xff]
          %v766 = vadd.f32 %v750, %v758
          %v767 = vadd.f32 %v751, %v759
          %v768 = vadd.f32 %v752, %v760
          %v769 = vadd.f32 %v753, %v761
          %v770 = vadd.f32 %v754, %v762
          %v771 = vadd.f32 %v755, %v763
          %v772 = vadd.f32 %v756, %v764
          %v773 = vadd.f32 %v757, %v765
          %v774 = vld [vmem:[%s577 + $0x48] sm:$0xff]
          %v775 = vld [vmem:[%s577 + $0x148] sm:$0xff]
          %v776 = vld [vmem:[%s577 + $0x248] sm:$0xff]
          %v777 = vld [vmem:[%s577 + $0x348] sm:$0xff]
          %v778 = vld [vmem:[%s577 + $0x448] sm:$0xff]
          %v779 = vld [vmem:[%s577 + $0x548] sm:$0xff]
          %v780 = vld [vmem:[%s577 + $0x648] sm:$0xff]
          %v781 = vld [vmem:[%s577 + $0x748] sm:$0xff]
          %v782 = vadd.f32 %v766, %v774
          %v783 = vadd.f32 %v767, %v775
          %v784 = vadd.f32 %v768, %v776
          %v785 = vadd.f32 %v769, %v777
          %v786 = vadd.f32 %v770, %v778
          %v787 = vadd.f32 %v771, %v779
          %v788 = vadd.f32 %v772, %v780
          %v789 = vadd.f32 %v773, %v781
          %v790 = vld [vmem:[%s577 + $0x50] sm:$0xff]
          %v791 = vld [vmem:[%s577 + $0x150] sm:$0xff]
          %v792 = vld [vmem:[%s577 + $0x250] sm:$0xff]
          %v793 = vld [vmem:[%s577 + $0x350] sm:$0xff]
          %v794 = vld [vmem:[%s577 + $0x450] sm:$0xff]
          %v795 = vld [vmem:[%s577 + $0x550] sm:$0xff]
          %v796 = vld [vmem:[%s577 + $0x650] sm:$0xff]
          %v797 = vld [vmem:[%s577 + $0x750] sm:$0xff]
          %v798 = vadd.f32 %v782, %v790
          %v799 = vadd.f32 %v783, %v791
          %v800 = vadd.f32 %v784, %v792
          %v801 = vadd.f32 %v785, %v793
          %v802 = vadd.f32 %v786, %v794
          %v803 = vadd.f32 %v787, %v795
          %v804 = vadd.f32 %v788, %v796
          %v805 = vadd.f32 %v789, %v797
          %v806 = vld [vmem:[%s577 + $0x58] sm:$0xff]
          %v807 = vld [vmem:[%s577 + $0x158] sm:$0xff]
          %v808 = vld [vmem:[%s577 + $0x258] sm:$0xff]
          %v809 = vld [vmem:[%s577 + $0x358] sm:$0xff]
          %v810 = vld [vmem:[%s577 + $0x458] sm:$0xff]
          %v811 = vld [vmem:[%s577 + $0x558] sm:$0xff]
          %v812 = vld [vmem:[%s577 + $0x658] sm:$0xff]
          %v813 = vld [vmem:[%s577 + $0x758] sm:$0xff]
          %v814 = vadd.f32 %v798, %v806
          %v815 = vadd.f32 %v799, %v807
          %v816 = vadd.f32 %v800, %v808
          %v817 = vadd.f32 %v801, %v809
          %v818 = vadd.f32 %v802, %v810
          %v819 = vadd.f32 %v803, %v811
          %v820 = vadd.f32 %v804, %v812
          %v821 = vadd.f32 %v805, %v813
          %v822 = vld [vmem:[%s577 + $0x60] sm:$0xff]
          %v823 = vld [vmem:[%s577 + $0x160] sm:$0xff]
          %v824 = vld [vmem:[%s577 + $0x260] sm:$0xff]
          %v825 = vld [vmem:[%s577 + $0x360] sm:$0xff]
          %v826 = vld [vmem:[%s577 + $0x460] sm:$0xff]
          %v827 = vld [vmem:[%s577 + $0x560] sm:$0xff]
          %v828 = vld [vmem:[%s577 + $0x660] sm:$0xff]
          %v829 = vld [vmem:[%s577 + $0x760] sm:$0xff]
          %v830 = vadd.f32 %v814, %v822
          %v831 = vadd.f32 %v815, %v823
          %v832 = vadd.f32 %v816, %v824
          %v833 = vadd.f32 %v817, %v825
          %v834 = vadd.f32 %v818, %v826
          %v835 = vadd.f32 %v819, %v827
          %v836 = vadd.f32 %v820, %v828
          %v837 = vadd.f32 %v821, %v829
          %v838 = vld [vmem:[%s577 + $0x68] sm:$0xff]
          %v839 = vld [vmem:[%s577 + $0x168] sm:$0xff]
          %v840 = vld [vmem:[%s577 + $0x268] sm:$0xff]
          %v841 = vld [vmem:[%s577 + $0x368] sm:$0xff]
          %v842 = vld [vmem:[%s577 + $0x468] sm:$0xff]
          %v843 = vld [vmem:[%s577 + $0x568] sm:$0xff]
          %v844 = vld [vmem:[%s577 + $0x668] sm:$0xff]
          %v845 = vld [vmem:[%s577 + $0x768] sm:$0xff]
          %v846 = vadd.f32 %v830, %v838
          %v847 = vadd.f32 %v831, %v839
          %v848 = vadd.f32 %v832, %v840
          %v849 = vadd.f32 %v833, %v841
          %v850 = vadd.f32 %v834, %v842
          %v851 = vadd.f32 %v835, %v843
          %v852 = vadd.f32 %v836, %v844
          %v853 = vadd.f32 %v837, %v845
          %v854 = vld [vmem:[%s577 + $0x70] sm:$0xff]
          %v855 = vld [vmem:[%s577 + $0x170] sm:$0xff]
          %v856 = vld [vmem:[%s577 + $0x270] sm:$0xff]
          %v857 = vld [vmem:[%s577 + $0x370] sm:$0xff]
          %v858 = vld [vmem:[%s577 + $0x470] sm:$0xff]
          %v859 = vld [vmem:[%s577 + $0x570] sm:$0xff]
          %v860 = vld [vmem:[%s577 + $0x670] sm:$0xff]
          %v861 = vld [vmem:[%s577 + $0x770] sm:$0xff]
          %v862 = vadd.f32 %v846, %v854
          %v863 = vadd.f32 %v847, %v855
          %v864 = vadd.f32 %v848, %v856
          %v865 = vadd.f32 %v849, %v857
          %v866 = vadd.f32 %v850, %v858
          %v867 = vadd.f32 %v851, %v859
          %v868 = vadd.f32 %v852, %v860
          %v869 = vadd.f32 %v853, %v861
          %v870 = vld [vmem:[%s577 + $0x78] sm:$0xff]
          %v871 = vld [vmem:[%s577 + $0x178] sm:$0xff]
          %v872 = vld [vmem:[%s577 + $0x278] sm:$0xff]
          %v873 = vld [vmem:[%s577 + $0x378] sm:$0xff]
          %v874 = vld [vmem:[%s577 + $0x478] sm:$0xff]
          %v875 = vld [vmem:[%s577 + $0x578] sm:$0xff]
          %v876 = vld [vmem:[%s577 + $0x678] sm:$0xff]
          %v877 = vld [vmem:[%s577 + $0x778] sm:$0xff]
          %v878 = vadd.f32 %v862, %v870
          %v879 = vadd.f32 %v863, %v871
          %v880 = vadd.f32 %v864, %v872
          %v881 = vadd.f32 %v865, %v873
          %v882 = vadd.f32 %v866, %v874
          %v883 = vadd.f32 %v867, %v875
          %v884 = vadd.f32 %v868, %v876
          %v885 = vadd.f32 %v869, %v877
          %v886 = vld [vmem:[%s577 + $0x80] sm:$0xff]
          %v887 = vld [vmem:[%s577 + $0x180] sm:$0xff]
          %v888 = vld [vmem:[%s577 + $0x280] sm:$0xff]
          %v889 = vld [vmem:[%s577 + $0x380] sm:$0xff]
          %v890 = vld [vmem:[%s577 + $0x480] sm:$0xff]
          %v891 = vld [vmem:[%s577 + $0x580] sm:$0xff]
          %v892 = vld [vmem:[%s577 + $0x680] sm:$0xff]
          %v893 = vld [vmem:[%s577 + $0x780] sm:$0xff]
          %v894 = vadd.f32 %v878, %v886
          %v895 = vadd.f32 %v879, %v887
          %v896 = vadd.f32 %v880, %v888
          %v897 = vadd.f32 %v881, %v889
          %v898 = vadd.f32 %v882, %v890
          %v899 = vadd.f32 %v883, %v891
          %v900 = vadd.f32 %v884, %v892
          %v901 = vadd.f32 %v885, %v893
          %v902 = vld [vmem:[%s577 + $0x88] sm:$0xff]
          %v903 = vld [vmem:[%s577 + $0x188] sm:$0xff]
          %v904 = vld [vmem:[%s577 + $0x288] sm:$0xff]
          %v905 = vld [vmem:[%s577 + $0x388] sm:$0xff]
          %v906 = vld [vmem:[%s577 + $0x488] sm:$0xff]
          %v907 = vld [vmem:[%s577 + $0x588] sm:$0xff]
          %v908 = vld [vmem:[%s577 + $0x688] sm:$0xff]
          %v909 = vld [vmem:[%s577 + $0x788] sm:$0xff]
          %v910 = vadd.f32 %v894, %v902
          %v911 = vadd.f32 %v895, %v903
          %v912 = vadd.f32 %v896, %v904
          %v913 = vadd.f32 %v897, %v905
          %v914 = vadd.f32 %v898, %v906
          %v915 = vadd.f32 %v899, %v907
          %v916 = vadd.f32 %v900, %v908
          %v917 = vadd.f32 %v901, %v909
          %v918 = vld [vmem:[%s577 + $0x90] sm:$0xff]
          %v919 = vld [vmem:[%s577 + $0x190] sm:$0xff]
          %v920 = vld [vmem:[%s577 + $0x290] sm:$0xff]
          %v921 = vld [vmem:[%s577 + $0x390] sm:$0xff]
          %v922 = vld [vmem:[%s577 + $0x490] sm:$0xff]
          %v923 = vld [vmem:[%s577 + $0x590] sm:$0xff]
          %v924 = vld [vmem:[%s577 + $0x690] sm:$0xff]
          %v925 = vld [vmem:[%s577 + $0x790] sm:$0xff]
          %v926 = vadd.f32 %v910, %v918
          %v927 = vadd.f32 %v911, %v919
          %v928 = vadd.f32 %v912, %v920
          %v929 = vadd.f32 %v913, %v921
          %v930 = vadd.f32 %v914, %v922
          %v931 = vadd.f32 %v915, %v923
          %v932 = vadd.f32 %v916, %v924
          %v933 = vadd.f32 %v917, %v925
          %v934 = vld [vmem:[%s577 + $0x98] sm:$0xff]
          %v935 = vld [vmem:[%s577 + $0x198] sm:$0xff]
          %v936 = vld [vmem:[%s577 + $0x298] sm:$0xff]
          %v937 = vld [vmem:[%s577 + $0x398] sm:$0xff]
          %v938 = vld [vmem:[%s577 + $0x498] sm:$0xff]
          %v939 = vld [vmem:[%s577 + $0x598] sm:$0xff]
          %v940 = vld [vmem:[%s577 + $0x698] sm:$0xff]
          %v941 = vld [vmem:[%s577 + $0x798] sm:$0xff]
          %v942 = vadd.f32 %v926, %v934
          %v943 = vadd.f32 %v927, %v935
          %v944 = vadd.f32 %v928, %v936
          %v945 = vadd.f32 %v929, %v937
          %v946 = vadd.f32 %v930, %v938
          %v947 = vadd.f32 %v931, %v939
          %v948 = vadd.f32 %v932, %v940
          %v949 = vadd.f32 %v933, %v941
          %v950 = vld [vmem:[%s577 + $0xa0] sm:$0xff]
          %v951 = vld [vmem:[%s577 + $0x1a0] sm:$0xff]
          %v952 = vld [vmem:[%s577 + $0x2a0] sm:$0xff]
          %v953 = vld [vmem:[%s577 + $0x3a0] sm:$0xff]
          %v954 = vld [vmem:[%s577 + $0x4a0] sm:$0xff]
          %v955 = vld [vmem:[%s577 + $0x5a0] sm:$0xff]
          %v956 = vld [vmem:[%s577 + $0x6a0] sm:$0xff]
          %v957 = vld [vmem:[%s577 + $0x7a0] sm:$0xff]
          %v958 = vadd.f32 %v942, %v950
          %v959 = vadd.f32 %v943, %v951
          %v960 = vadd.f32 %v944, %v952
          %v961 = vadd.f32 %v945, %v953
          %v962 = vadd.f32 %v946, %v954
          %v963 = vadd.f32 %v947, %v955
          %v964 = vadd.f32 %v948, %v956
          %v965 = vadd.f32 %v949, %v957
          %v966 = vld [vmem:[%s577 + $0xa8] sm:$0xff]
          %v967 = vld [vmem:[%s577 + $0x1a8] sm:$0xff]
          %v968 = vld [vmem:[%s577 + $0x2a8] sm:$0xff]
          %v969 = vld [vmem:[%s577 + $0x3a8] sm:$0xff]
          %v970 = vld [vmem:[%s577 + $0x4a8] sm:$0xff]
          %v971 = vld [vmem:[%s577 + $0x5a8] sm:$0xff]
          %v972 = vld [vmem:[%s577 + $0x6a8] sm:$0xff]
          %v973 = vld [vmem:[%s577 + $0x7a8] sm:$0xff]
          %v974 = vadd.f32 %v958, %v966
          %v975 = vadd.f32 %v959, %v967
          %v976 = vadd.f32 %v960, %v968
          %v977 = vadd.f32 %v961, %v969
          %v978 = vadd.f32 %v962, %v970
          %v979 = vadd.f32 %v963, %v971
          %v980 = vadd.f32 %v964, %v972
          %v981 = vadd.f32 %v965, %v973
          %v982 = vld [vmem:[%s577 + $0xb0] sm:$0xff]
          %v983 = vld [vmem:[%s577 + $0x1b0] sm:$0xff]
          %v984 = vld [vmem:[%s577 + $0x2b0] sm:$0xff]
          %v985 = vld [vmem:[%s577 + $0x3b0] sm:$0xff]
          %v986 = vld [vmem:[%s577 + $0x4b0] sm:$0xff]
          %v987 = vld [vmem:[%s577 + $0x5b0] sm:$0xff]
          %v988 = vld [vmem:[%s577 + $0x6b0] sm:$0xff]
          %v989 = vld [vmem:[%s577 + $0x7b0] sm:$0xff]
          %v990 = vadd.f32 %v974, %v982
          %v991 = vadd.f32 %v975, %v983
          %v992 = vadd.f32 %v976, %v984
          %v993 = vadd.f32 %v977, %v985
          %v994 = vadd.f32 %v978, %v986
          %v995 = vadd.f32 %v979, %v987
          %v996 = vadd.f32 %v980, %v988
          %v997 = vadd.f32 %v981, %v989
          %v998 = vld [vmem:[%s577 + $0xb8] sm:$0xff]
          %v999 = vld [vmem:[%s577 + $0x1b8] sm:$0xff]
          %v1000 = vld [vmem:[%s577 + $0x2b8] sm:$0xff]
          %v1001 = vld [vmem:[%s577 + $0x3b8] sm:$0xff]
          %v1002 = vld [vmem:[%s577 + $0x4b8] sm:$0xff]
          %v1003 = vld [vmem:[%s577 + $0x5b8] sm:$0xff]
          %v1004 = vld [vmem:[%s577 + $0x6b8] sm:$0xff]
          %v1005 = vld [vmem:[%s577 + $0x7b8] sm:$0xff]
          %v1006 = vadd.f32 %v990, %v998
          %v1007 = vadd.f32 %v991, %v999
          %v1008 = vadd.f32 %v992, %v1000
          %v1009 = vadd.f32 %v993, %v1001
          %v1010 = vadd.f32 %v994, %v1002
          %v1011 = vadd.f32 %v995, %v1003
          %v1012 = vadd.f32 %v996, %v1004
          %v1013 = vadd.f32 %v997, %v1005
          %v1014 = vld [vmem:[%s577 + $0xc0] sm:$0xff]
          %v1015 = vld [vmem:[%s577 + $0x1c0] sm:$0xff]
          %v1016 = vld [vmem:[%s577 + $0x2c0] sm:$0xff]
          %v1017 = vld [vmem:[%s577 + $0x3c0] sm:$0xff]
          %v1018 = vld [vmem:[%s577 + $0x4c0] sm:$0xff]
          %v1019 = vld [vmem:[%s577 + $0x5c0] sm:$0xff]
          %v1020 = vld [vmem:[%s577 + $0x6c0] sm:$0xff]
          %v1021 = vld [vmem:[%s577 + $0x7c0] sm:$0xff]
          %v1022 = vadd.f32 %v1006, %v1014
          %v1023 = vadd.f32 %v1007, %v1015
          %v1024 = vadd.f32 %v1008, %v1016
          %v1025 = vadd.f32 %v1009, %v1017
          %v1026 = vadd.f32 %v1010, %v1018
          %v1027 = vadd.f32 %v1011, %v1019
          %v1028 = vadd.f32 %v1012, %v1020
          %v1029 = vadd.f32 %v1013, %v1021
          %v1030 = vld [vmem:[%s577 + $0xc8] sm:$0xff]
          %v1031 = vld [vmem:[%s577 + $0x1c8] sm:$0xff]
          %v1032 = vld [vmem:[%s577 + $0x2c8] sm:$0xff]
          %v1033 = vld [vmem:[%s577 + $0x3c8] sm:$0xff]
          %v1034 = vld [vmem:[%s577 + $0x4c8] sm:$0xff]
          %v1035 = vld [vmem:[%s577 + $0x5c8] sm:$0xff]
          %v1036 = vld [vmem:[%s577 + $0x6c8] sm:$0xff]
          %v1037 = vld [vmem:[%s577 + $0x7c8] sm:$0xff]
          %v1038 = vadd.f32 %v1022, %v1030
          %v1039 = vadd.f32 %v1023, %v1031
          %v1040 = vadd.f32 %v1024, %v1032
          %v1041 = vadd.f32 %v1025, %v1033
          %v1042 = vadd.f32 %v1026, %v1034
          %v1043 = vadd.f32 %v1027, %v1035
          %v1044 = vadd.f32 %v1028, %v1036
          %v1045 = vadd.f32 %v1029, %v1037
          %v1046 = vld [vmem:[%s577 + $0xd0] sm:$0xff]
          %v1047 = vld [vmem:[%s577 + $0x1d0] sm:$0xff]
          %v1048 = vld [vmem:[%s577 + $0x2d0] sm:$0xff]
          %v1049 = vld [vmem:[%s577 + $0x3d0] sm:$0xff]
          %v1050 = vld [vmem:[%s577 + $0x4d0] sm:$0xff]
          %v1051 = vld [vmem:[%s577 + $0x5d0] sm:$0xff]
          %v1052 = vld [vmem:[%s577 + $0x6d0] sm:$0xff]
          %v1053 = vld [vmem:[%s577 + $0x7d0] sm:$0xff]
          %v1054 = vadd.f32 %v1038, %v1046
          %v1055 = vadd.f32 %v1039, %v1047
          %v1056 = vadd.f32 %v1040, %v1048
          %v1057 = vadd.f32 %v1041, %v1049
          %v1058 = vadd.f32 %v1042, %v1050
          %v1059 = vadd.f32 %v1043, %v1051
          %v1060 = vadd.f32 %v1044, %v1052
          %v1061 = vadd.f32 %v1045, %v1053
          %v1062 = vld [vmem:[%s577 + $0xd8] sm:$0xff]
          %v1063 = vld [vmem:[%s577 + $0x1d8] sm:$0xff]
          %v1064 = vld [vmem:[%s577 + $0x2d8] sm:$0xff]
          %v1065 = vld [vmem:[%s577 + $0x3d8] sm:$0xff]
          %v1066 = vld [vmem:[%s577 + $0x4d8] sm:$0xff]
          %v1067 = vld [vmem:[%s577 + $0x5d8] sm:$0xff]
          %v1068 = vld [vmem:[%s577 + $0x6d8] sm:$0xff]
          %v1069 = vld [vmem:[%s577 + $0x7d8] sm:$0xff]
          %v1070 = vadd.f32 %v1054, %v1062
          %v1071 = vadd.f32 %v1055, %v1063
          %v1072 = vadd.f32 %v1056, %v1064
          %v1073 = vadd.f32 %v1057, %v1065
          %v1074 = vadd.f32 %v1058, %v1066
          %v1075 = vadd.f32 %v1059, %v1067
          %v1076 = vadd.f32 %v1060, %v1068
          %v1077 = vadd.f32 %v1061, %v1069
          %v1078 = vld [vmem:[%s577 + $0xe0] sm:$0xff]
          %v1079 = vld [vmem:[%s577 + $0x1e0] sm:$0xff]
          %v1080 = vld [vmem:[%s577 + $0x2e0] sm:$0xff]
          %v1081 = vld [vmem:[%s577 + $0x3e0] sm:$0xff]
          %v1082 = vld [vmem:[%s577 + $0x4e0] sm:$0xff]
          %v1083 = vld [vmem:[%s577 + $0x5e0] sm:$0xff]
          %v1084 = vld [vmem:[%s577 + $0x6e0] sm:$0xff]
          %v1085 = vld [vmem:[%s577 + $0x7e0] sm:$0xff]
          %v1086 = vadd.f32 %v1070, %v1078
          %v1087 = vadd.f32 %v1071, %v1079
          %v1088 = vadd.f32 %v1072, %v1080
          %v1089 = vadd.f32 %v1073, %v1081
          %v1090 = vadd.f32 %v1074, %v1082
          %v1091 = vadd.f32 %v1075, %v1083
          %v1092 = vadd.f32 %v1076, %v1084
          %v1093 = vadd.f32 %v1077, %v1085
          %v1094 = vld [vmem:[%s577 + $0xe8] sm:$0xff]
          %v1095 = vld [vmem:[%s577 + $0x1e8] sm:$0xff]
          %v1096 = vld [vmem:[%s577 + $0x2e8] sm:$0xff]
          %v1097 = vld [vmem:[%s577 + $0x3e8] sm:$0xff]
          %v1098 = vld [vmem:[%s577 + $0x4e8] sm:$0xff]
          %v1099 = vld [vmem:[%s577 + $0x5e8] sm:$0xff]
          %v1100 = vld [vmem:[%s577 + $0x6e8] sm:$0xff]
          %v1101 = vld [vmem:[%s577 + $0x7e8] sm:$0xff]
          %v1102 = vadd.f32 %v1086, %v1094
          %v1103 = vadd.f32 %v1087, %v1095
          %v1104 = vadd.f32 %v1088, %v1096
          %v1105 = vadd.f32 %v1089, %v1097
          %v1106 = vadd.f32 %v1090, %v1098
          %v1107 = vadd.f32 %v1091, %v1099
          %v1108 = vadd.f32 %v1092, %v1100
          %v1109 = vadd.f32 %v1093, %v1101
          %v1110 = vld [vmem:[%s577 + $0xf0] sm:$0xff]
          %v1111 = vld [vmem:[%s577 + $0x1f0] sm:$0xff]
          %v1112 = vld [vmem:[%s577 + $0x2f0] sm:$0xff]
          %v1113 = vld [vmem:[%s577 + $0x3f0] sm:$0xff]
          %v1114 = vld [vmem:[%s577 + $0x4f0] sm:$0xff]
          %v1115 = vld [vmem:[%s577 + $0x5f0] sm:$0xff]
          %v1116 = vld [vmem:[%s577 + $0x6f0] sm:$0xff]
          %v1117 = vld [vmem:[%s577 + $0x7f0] sm:$0xff]
          %v1118 = vadd.f32 %v1102, %v1110
          %v1119 = vadd.f32 %v1103, %v1111
          %v1120 = vadd.f32 %v1104, %v1112
          %v1121 = vadd.f32 %v1105, %v1113
          %v1122 = vadd.f32 %v1106, %v1114
          %v1123 = vadd.f32 %v1107, %v1115
          %v1124 = vadd.f32 %v1108, %v1116
          %v1125 = vadd.f32 %v1109, %v1117
          %v1126 = vld [vmem:[%s577 + $0xf8] sm:$0xff]
          %v1127 = vld [vmem:[%s577 + $0x1f8] sm:$0xff]
          %v1128 = vld [vmem:[%s577 + $0x2f8] sm:$0xff]
          %v1129 = vld [vmem:[%s577 + $0x3f8] sm:$0xff]
          %v1130 = vld [vmem:[%s577 + $0x4f8] sm:$0xff]
          %v1131 = vld [vmem:[%s577 + $0x5f8] sm:$0xff]
          %v1132 = vld [vmem:[%s577 + $0x6f8] sm:$0xff]
          %v1133 = vld [vmem:[%s577 + $0x7f8] sm:$0xff]
          %v1134 = vadd.f32 %v1118, %v1126
          %v1135 = vadd.f32 %v1119, %v1127
          %v1136 = vadd.f32 %v1120, %v1128
          %v1137 = vadd.f32 %v1121, %v1129
          %v1138 = vadd.f32 %v1122, %v1130
          %v1139 = vadd.f32 %v1123, %v1131
          %v1140 = vadd.f32 %v1124, %v1132
          %v1141 = vadd.f32 %v1125, %v1133
          %1142 = vst [vmem:[#allocation2] sm:$0xff] %v1134
          %1143 = vst [vmem:[#allocation2 + $0x8] sm:$0xff] %v1135
          %1144 = vst [vmem:[#allocation2 + $0x10] sm:$0xff] %v1136
          %1145 = vst [vmem:[#allocation2 + $0x18] sm:$0xff] %v1137
          %1146 = vst [vmem:[#allocation2 + $0x20] sm:$0xff] %v1138
          %1147 = vst [vmem:[#allocation2 + $0x28] sm:$0xff] %v1139
          %1148 = vst [vmem:[#allocation2 + $0x30] sm:$0xff] %v1140
          %1149 = vst [vmem:[#allocation2 + $0x38] sm:$0xff] %v1141
        $region98: #{channel_attention_forward.1} parent=85 // pred_fallthru
          _
        %p1150 = scmp.eq.s32.totalorder %s17, 1
        // Predicated region
        $region99: #{channel_attention_forward.1} parent=85 // pred_check
          %p1151 = pneg %p1150
        $region100: #{channel_attention_forward.1} parent=85 // pred_check_branch
          %1153 = sbr.rel (%p1151) target = $region102
        $region101: #{channel_attention_forward.1} parent=85 // pred_region
          %v1154 = vld [vmem:[#allocation2] sm:$0xff]
          %v1155 = vld [vmem:[#allocation2 + $0x8] sm:$0xff]
          %v1156 = vld [vmem:[#allocation2 + $0x10] sm:$0xff]
          %v1157 = vld [vmem:[#allocation2 + $0x18] sm:$0xff]
          %v1158 = vld [vmem:[#allocation2 + $0x20] sm:$0xff]
          %v1159 = vld [vmem:[#allocation2 + $0x28] sm:$0xff]
          %v1160 = vld [vmem:[#allocation2 + $0x30] sm:$0xff]
          %v1161 = vld [vmem:[#allocation2 + $0x38] sm:$0xff]
          %v1162 = vld [vmem:[%s577] sm:$0xff]
          %v1163 = vld [vmem:[%s577 + $0x100] sm:$0xff]
          %v1164 = vld [vmem:[%s577 + $0x200] sm:$0xff]
          %v1165 = vld [vmem:[%s577 + $0x300] sm:$0xff]
          %v1166 = vld [vmem:[%s577 + $0x400] sm:$0xff]
          %v1167 = vld [vmem:[%s577 + $0x500] sm:$0xff]
          %v1168 = vld [vmem:[%s577 + $0x600] sm:$0xff]
          %v1169 = vld [vmem:[%s577 + $0x700] sm:$0xff]
          %v1170 = vadd.f32 %v1154, %v1162
          %v1171 = vadd.f32 %v1155, %v1163
          %v1172 = vadd.f32 %v1156, %v1164
          %v1173 = vadd.f32 %v1157, %v1165
          %v1174 = vadd.f32 %v1158, %v1166
          %v1175 = vadd.f32 %v1159, %v1167
          %v1176 = vadd.f32 %v1160, %v1168
          %v1177 = vadd.f32 %v1161, %v1169
          %v1178 = vld [vmem:[%s577 + $0x8] sm:$0xff]
          %v1179 = vld [vmem:[%s577 + $0x108] sm:$0xff]
          %v1180 = vld [vmem:[%s577 + $0x208] sm:$0xff]
          %v1181 = vld [vmem:[%s577 + $0x308] sm:$0xff]
          %v1182 = vld [vmem:[%s577 + $0x408] sm:$0xff]
          %v1183 = vld [vmem:[%s577 + $0x508] sm:$0xff]
          %v1184 = vld [vmem:[%s577 + $0x608] sm:$0xff]
          %v1185 = vld [vmem:[%s577 + $0x708] sm:$0xff]
          %v1186 = vadd.f32 %v1170, %v1178
          %v1187 = vadd.f32 %v1171, %v1179
          %v1188 = vadd.f32 %v1172, %v1180
          %v1189 = vadd.f32 %v1173, %v1181
          %v1190 = vadd.f32 %v1174, %v1182
          %v1191 = vadd.f32 %v1175, %v1183
          %v1192 = vadd.f32 %v1176, %v1184
          %v1193 = vadd.f32 %v1177, %v1185
          %v1194 = vld [vmem:[%s577 + $0x10] sm:$0xff]
          %v1195 = vld [vmem:[%s577 + $0x110] sm:$0xff]
          %v1196 = vld [vmem:[%s577 + $0x210] sm:$0xff]
          %v1197 = vld [vmem:[%s577 + $0x310] sm:$0xff]
          %v1198 = vld [vmem:[%s577 + $0x410] sm:$0xff]
          %v1199 = vld [vmem:[%s577 + $0x510] sm:$0xff]
          %v1200 = vld [vmem:[%s577 + $0x610] sm:$0xff]
          %v1201 = vld [vmem:[%s577 + $0x710] sm:$0xff]
          %v1202 = vadd.f32 %v1186, %v1194
          %v1203 = vadd.f32 %v1187, %v1195
          %v1204 = vadd.f32 %v1188, %v1196
          %v1205 = vadd.f32 %v1189, %v1197
          %v1206 = vadd.f32 %v1190, %v1198
          %v1207 = vadd.f32 %v1191, %v1199
          %v1208 = vadd.f32 %v1192, %v1200
          %v1209 = vadd.f32 %v1193, %v1201
          %v1210 = vld [vmem:[%s577 + $0x18] sm:$0xff]
          %v1211 = vld [vmem:[%s577 + $0x118] sm:$0xff]
          %v1212 = vld [vmem:[%s577 + $0x218] sm:$0xff]
          %v1213 = vld [vmem:[%s577 + $0x318] sm:$0xff]
          %v1214 = vld [vmem:[%s577 + $0x418] sm:$0xff]
          %v1215 = vld [vmem:[%s577 + $0x518] sm:$0xff]
          %v1216 = vld [vmem:[%s577 + $0x618] sm:$0xff]
          %v1217 = vld [vmem:[%s577 + $0x718] sm:$0xff]
          %v1218 = vadd.f32 %v1202, %v1210
          %v1219 = vadd.f32 %v1203, %v1211
          %v1220 = vadd.f32 %v1204, %v1212
          %v1221 = vadd.f32 %v1205, %v1213
          %v1222 = vadd.f32 %v1206, %v1214
          %v1223 = vadd.f32 %v1207, %v1215
          %v1224 = vadd.f32 %v1208, %v1216
          %v1225 = vadd.f32 %v1209, %v1217
          %v1226 = vld [vmem:[%s577 + $0x20] sm:$0xff]
          %v1227 = vld [vmem:[%s577 + $0x120] sm:$0xff]
          %v1228 = vld [vmem:[%s577 + $0x220] sm:$0xff]
          %v1229 = vld [vmem:[%s577 + $0x320] sm:$0xff]
          %v1230 = vld [vmem:[%s577 + $0x420] sm:$0xff]
          %v1231 = vld [vmem:[%s577 + $0x520] sm:$0xff]
          %v1232 = vld [vmem:[%s577 + $0x620] sm:$0xff]
          %v1233 = vld [vmem:[%s577 + $0x720] sm:$0xff]
          %v1234 = vadd.f32 %v1218, %v1226
          %v1235 = vadd.f32 %v1219, %v1227
          %v1236 = vadd.f32 %v1220, %v1228
          %v1237 = vadd.f32 %v1221, %v1229
          %v1238 = vadd.f32 %v1222, %v1230
          %v1239 = vadd.f32 %v1223, %v1231
          %v1240 = vadd.f32 %v1224, %v1232
          %v1241 = vadd.f32 %v1225, %v1233
          %v1242 = vld [vmem:[%s577 + $0x28] sm:$0xff]
          %v1243 = vld [vmem:[%s577 + $0x128] sm:$0xff]
          %v1244 = vld [vmem:[%s577 + $0x228] sm:$0xff]
          %v1245 = vld [vmem:[%s577 + $0x328] sm:$0xff]
          %v1246 = vld [vmem:[%s577 + $0x428] sm:$0xff]
          %v1247 = vld [vmem:[%s577 + $0x528] sm:$0xff]
          %v1248 = vld [vmem:[%s577 + $0x628] sm:$0xff]
          %v1249 = vld [vmem:[%s577 + $0x728] sm:$0xff]
          %v1250 = vadd.f32 %v1234, %v1242
          %v1251 = vadd.f32 %v1235, %v1243
          %v1252 = vadd.f32 %v1236, %v1244
          %v1253 = vadd.f32 %v1237, %v1245
          %v1254 = vadd.f32 %v1238, %v1246
          %v1255 = vadd.f32 %v1239, %v1247
          %v1256 = vadd.f32 %v1240, %v1248
          %v1257 = vadd.f32 %v1241, %v1249
          %v1258 = vld [vmem:[%s577 + $0x30] sm:$0xff]
          %v1259 = vld [vmem:[%s577 + $0x130] sm:$0xff]
          %v1260 = vld [vmem:[%s577 + $0x230] sm:$0xff]
          %v1261 = vld [vmem:[%s577 + $0x330] sm:$0xff]
          %v1262 = vld [vmem:[%s577 + $0x430] sm:$0xff]
          %v1263 = vld [vmem:[%s577 + $0x530] sm:$0xff]
          %v1264 = vld [vmem:[%s577 + $0x630] sm:$0xff]
          %v1265 = vld [vmem:[%s577 + $0x730] sm:$0xff]
          %v1266 = vlaneseq
          %v1267 = vand.u32 %v1266, 127
          %vm1268 = vcmp.lt.s32.totalorder %v1267, 49
          %v1269 = vsel %vm1268, %v1258, 0.0
          %v1270 = vsel %vm1268, %v1259, 0.0
          %v1271 = vsel %vm1268, %v1260, 0.0
          %v1272 = vsel %vm1268, %v1261, 0.0
          %v1273 = vsel %vm1268, %v1262, 0.0
          %v1274 = vsel %vm1268, %v1263, 0.0
          %v1275 = vsel %vm1268, %v1264, 0.0
          %v1276 = vsel %vm1268, %v1265, 0.0
          %v1277 = vadd.f32 %v1250, %v1269
          %v1278 = vadd.f32 %v1251, %v1270
          %v1279 = vadd.f32 %v1252, %v1271
          %v1280 = vadd.f32 %v1253, %v1272
          %v1281 = vadd.f32 %v1254, %v1273
          %v1282 = vadd.f32 %v1255, %v1274
          %v1283 = vadd.f32 %v1256, %v1275
          %v1284 = vadd.f32 %v1257, %v1276
          %1285 = vst [vmem:[#allocation2] sm:$0xff] %v1277
          %1286 = vst [vmem:[#allocation2 + $0x8] sm:$0xff] %v1278
          %1287 = vst [vmem:[#allocation2 + $0x10] sm:$0xff] %v1279
          %1288 = vst [vmem:[#allocation2 + $0x18] sm:$0xff] %v1280
          %1289 = vst [vmem:[#allocation2 + $0x20] sm:$0xff] %v1281
          %1290 = vst [vmem:[#allocation2 + $0x28] sm:$0xff] %v1282
          %1291 = vst [vmem:[#allocation2 + $0x30] sm:$0xff] %v1283
          %1292 = vst [vmem:[#allocation2 + $0x38] sm:$0xff] %v1284
          %v1293 = vld [vmem:[#allocation2] sm:$0xff]
          %v1294 = vld [vmem:[#allocation2 + $0x8] sm:$0xff]
          %v1295 = vld [vmem:[#allocation2 + $0x10] sm:$0xff]
          %v1296 = vld [vmem:[#allocation2 + $0x18] sm:$0xff]
          %v1297 = vld [vmem:[#allocation2 + $0x20] sm:$0xff]
          %v1298 = vld [vmem:[#allocation2 + $0x28] sm:$0xff]
          %v1299 = vld [vmem:[#allocation2 + $0x30] sm:$0xff]
          %v1300 = vld [vmem:[#allocation2 + $0x38] sm:$0xff]
          %1301 = vadd.xlane.f32.xlu0 %v1293
          %v1302 = vpop.xlane.xlu0 %1301
          %1303 = vadd.xlane.f32.xlu0 %v1294
          %v1304 = vpop.xlane.xlu0 %1303
          %1305 = vadd.xlane.f32.xlu0 %v1295
          %v1306 = vpop.xlane.xlu0 %1305
          %1307 = vadd.xlane.f32.xlu0 %v1296
          %v1308 = vpop.xlane.xlu0 %1307
          %1309 = vadd.xlane.f32.xlu0 %v1297
          %v1310 = vpop.xlane.xlu0 %1309
          %1311 = vadd.xlane.f32.xlu0 %v1298
          %v1312 = vpop.xlane.xlu0 %1311
          %1313 = vadd.xlane.f32.xlu0 %v1299
          %v1314 = vpop.xlane.xlu0 %1313
          %1315 = vadd.xlane.f32.xlu0 %v1300
          %v1316 = vpop.xlane.xlu0 %1315
          %v1317 = vmul.f32 %v1302, 0.00020354163
          %v1318 = vmul.f32 %v1304, 0.00020354163
          %v1319 = vmul.f32 %v1306, 0.00020354163
          %v1320 = vmul.f32 %v1308, 0.00020354163
          %v1321 = vmul.f32 %v1310, 0.00020354163
          %v1322 = vmul.f32 %v1312, 0.00020354163
          %v1323 = vmul.f32 %v1314, 0.00020354163
          %v1324 = vmul.f32 %v1316, 0.00020354163
          %vm1325 = vcmask 7168
          %1326 = vst.msk [vmem:[%s604] sm:$0xff] %vm1325, %v1317
          %1327 = vst.msk [vmem:[%s604 + $0x8] sm:$0xff] %vm1325, %v1318
          %1328 = vst.msk [vmem:[%s604 + $0x10] sm:$0xff] %vm1325, %v1319
          %1329 = vst.msk [vmem:[%s604 + $0x18] sm:$0xff] %vm1325, %v1320
          %1330 = vst.msk [vmem:[%s604 + $0x20] sm:$0xff] %vm1325, %v1321
          %1331 = vst.msk [vmem:[%s604 + $0x28] sm:$0xff] %vm1325, %v1322
          %1332 = vst.msk [vmem:[%s604 + $0x30] sm:$0xff] %vm1325, %v1323
          %1333 = vst.msk [vmem:[%s604 + $0x38] sm:$0xff] %vm1325, %v1324
        $region102: #{channel_attention_forward.1} parent=85 // pred_fallthru
          _
        %s1334 = smul.u32 8, %s16
        %p1335 = scmp.lt.s32.totalorder %s1334, 15
        %s1336 = scalar_select %p1335, %s1334, 15
        %s1337 = smul.addr %s1336, 8
        %s1338 = scalar_lea.vmem %s1, %s1337
        // Predicated region
        $region103: #{channel_attention_forward.1} parent=85 // pred_check
          %p1339 = pneg %p70
        $region104: #{channel_attention_forward.1} parent=85 // pred_check_branch
          %1341 = sbr.rel (%p1339) target = $region106
        $region105: #{channel_attention_forward.1} parent=85 // pred_region
          %s1342 = smul.u32 8, %s16
        $region106: #{channel_attention_forward.1} parent=85 // pred_fallthru
          _
      $region86: #{channel_attention_forward.1} parent=5 // pred_fallthru
        _
      %p1343 = scmp.le.s32.totalorder 2, %s7
      // Predicated region
      $region107: #{channel_attention_forward.1} parent=5 // pred_check
        %p1344 = pneg %p1343
      $region108: #{channel_attention_forward.1} parent=5 // pred_check_branch
        %1346 = sbr.rel (%p1344) target = $region110
      $region109: #{channel_attention_forward.1} parent=5 // pred_region
        %s1347 = ssub.s32 %s7, 2
        // Predicated region
        $region111: #{channel_attention_forward.1} parent=109 // pred_check
          %p1348 = pneg %p76
        $region112: #{channel_attention_forward.1} parent=109 // pred_check_branch
          %1350 = sbr.rel (%p1348) target = $region114
        $region113: #{channel_attention_forward.1} parent=109 // pred_region
          %s1351 = smul.u32 8, %s18
          %p1352 = scmp.lt.s32.totalorder %s1351, 15
          %s1353 = scalar_select %p1352, %s1351, 15
          %s1354 = smul.addr %s1353, 8
          %s1355 = scalar_lea.vmem %s1, %s1354
        $region114: #{channel_attention_forward.1} parent=109 // pred_fallthru
          _
      $region110: #{channel_attention_forward.1} parent=5 // pred_fallthru
        _
    $region6: #{channel_attention_forward.1} parent=1 // loop_footer
      %s11 = sadd.s32 1, %s7
    $region7: #{channel_attention_forward.1} parent=1 // loop_footer_branch
      %6 = sbr.rel target = $region3
    $region8: #{channel_attention_forward.1} parent=1 // loop_exit
      _

</llo_original>
